<compile_context>
chip_gen: v5e
topology: v5e:2x2
jax: 0.10.0
libtpu: 0.0.40
codegen_flags: <defaults>
</compile_context>

<pallas_src>
import functools
from collections import deque

import jax
import jax.numpy as jnp
from jax import lax
from jax.experimental import pallas as pl
from jax.experimental.pallas import tpu as pltpu


# ----------------------------------------------------------------------------
# Fused Pallas kernel: entire cold-start streaming loop + postprocess head
# ----------------------------------------------------------------------------
def _fused_stream_kernel(x_ref, w_in_ref, w_mid_ref, w_cur_ref, w_his_ref,
                         b1_ref, b2_ref, wpost_ref, bpost_ref, out_ref,
                         xw_ref,
                         *, num_steps, rows, time_span, num_his, dim):
    """All (num_t2m_steps + time_span) streaming steps fused in one kernel.

    x_ref     : (S*N, F)  step-major stacked per-step agent features
    w_in_ref  : (F, D)            w_mid_ref : (time_span*D, D)
    w_cur_ref : (D, D)            w_his_ref : (num_his*D, D)
    b1/b2     : (1, D)
    wpost_ref : (D, K), bpost_ref : (1, K)
    out_ref   : (N, K)   postprocess output of the final step
    xw_ref    : (S*N, D) VMEM scratch for the hoisted x @ w_in + b1

    The rolling deques (x_a_mid_emb, x_a_his_enc) are loop-carried on-chip
    buffers laid out oldest->newest along the lane axis.  Nothing touches HBM
    between steps; only the final (N, K) result is stored.
    """
    S = num_steps
    N = rows
    D = dim
    K = out_ref.shape[1]

    # Prologue: hoist the carry-independent x @ w_in + b1 out of the serial
    # chain — one fat (S*N, F) x (F, D) matmul instead of 9 thin 16-row ones.
    xw_ref[...] = (
        jnp.dot(x_ref[...], w_in_ref[...], preferred_element_type=jnp.float32)
        + jnp.broadcast_to(b1_ref[...], (S * N, D)))

    # Loop-invariant weights / bias broadcasts hoisted (JAX does not CSE
    # broadcast_in_dim); the unrolled loop lets Mosaic keep the RHS weights
    # resident on the MXU across steps.
    w_mid = w_mid_ref[...]
    w_cur = w_cur_ref[...]
    w_his = w_his_ref[...]
    b2 = jnp.broadcast_to(b2_ref[...], (N, D))

    def body(s, carry):
        mid, his = carry                                   # (N,TS*D), (N,NH*D)
        row = pl.multiple_of(s * N, N)
        xw = xw_ref[pl.ds(row, N), :]                      # hoisted x@w_in+b1
        # hbm_model step: x_a_cur_emb = tanh(x@w_in + mid@w_mid + b1)
        h = jnp.tanh(xw + jnp.dot(mid, w_mid,
                                  preferred_element_type=jnp.float32))
        # x_a_cur = relu(h@w_cur + his@w_his + b2)  (split; no lane concat)
        y = jnp.maximum(
            jnp.dot(h, w_cur, preferred_element_type=jnp.float32)
            + jnp.dot(his, w_his, preferred_element_type=jnp.float32)
            + b2, 0.0)
        # deque.append: drop oldest D lanes, append newest at the end
        # (keeps oldest->newest layout matching torch.cat(list(deque), dim=2)).
        mid = jnp.concatenate([mid[:, D:], h], axis=-1)
        his = jnp.concatenate([his[:, D:], y], axis=-1)
        return mid, his

    mid0 = jnp.zeros((N, time_span * D), jnp.float32)
    his0 = jnp.zeros((N, num_his * D), jnp.float32)
    _, his = lax.fori_loop(0, S, body, (mid0, his0), unroll=True)

    # Postprocess on the final step's x_a_cur (newest element of x_a_his_enc).
    # Single final (N, K) masked store — negligible.
    y_final = his[:, (num_his - 1) * D:]
    out_ref[...] = (
        jnp.dot(y_final, wpost_ref[...], preferred_element_type=jnp.float32)
        + jnp.broadcast_to(bpost_ref[...], (N, K)))


# ----------------------------------------------------------------------------
# pallas_call wrapper (single launch, no grid, everything resident in VMEM)
# ----------------------------------------------------------------------------
def fused_stream_call(x_steps2d, params, *, num_steps, rows, time_span,
                      num_his, dim):
    K = params["w_post"].shape[1]
    kernel = functools.partial(
        _fused_stream_kernel,
        num_steps=num_steps, rows=rows,
        time_span=time_span, num_his=num_his, dim=dim)

    # Whole-array blocks (no grid): ~80 KB total resident VMEM, far under the
    # scoped limit on every generation (incl. v7x's 64 MiB physical VMEM).
    vmem = pl.BlockSpec(memory_space=pltpu.MemorySpace.VMEM)
    return pl.pallas_call(
        kernel,
        out_shape=jax.ShapeDtypeStruct((rows, K), jnp.float32),
        in_specs=[vmem] * 9,
        out_specs=vmem,
        scratch_shapes=[pltpu.VMEM((num_steps * rows, dim), jnp.float32)],
    )(x_steps2d, params["w_in"], params["w_mid"], params["w_cur"],
      params["w_his"], params["b1"], params["b2"],
      params["w_post"], params["b_post"])


# ----------------------------------------------------------------------------
# Whole forward jitted as ONE program (glue + kernel, no eager dispatches)
# ----------------------------------------------------------------------------
@functools.partial(
    jax.jit,
    static_argnames=("start", "num_steps", "time_span", "num_his",
                     "dim", "B", "A"))
def _qcnet_oe_forward(feats, params, *, start, num_steps, time_span, num_his,
                      dim, B, A):
    F = feats.shape[-1]
    # "preprocess": window of per-step feature slices, step-major, flattened
    # to (S*N, F) so the kernel's prologue matmul needs no in-kernel reshape.
    window = lax.slice_in_dim(feats, start, start + num_steps, axis=2)
    x_steps = jnp.transpose(window, (2, 0, 1, 3)).reshape(
        num_steps * B * A, F)
    out_flat = fused_stream_call(
        x_steps, params, num_steps=num_steps, rows=B * A,
        time_span=time_span, num_his=num_his, dim=dim)
    return out_flat.reshape(B, A, -1)


# ----------------------------------------------------------------------------
# Module (mirrors QCNetOEHbmInfer.forward cold-start streaming loop)
# ----------------------------------------------------------------------------
class QCNetOEHbmInfer:
    def __init__(self, params, example_data, quant_infer_cold_start=True):
        self.example_data = example_data
        self.quant_infer_cold_start = quant_infer_cold_start
        self.params = dict(params)
        # TODO(synk): hbm/hbir model loading, get_hbir_output_unflattener and
        # host<->device transfers (output_to_tensor / .to('cuda:0')) have no
        # Pallas equivalent; the opaque per-step hbm model is synthesized as a
        # small dense network whose streaming loop runs fused in one kernel.

    def __call__(self, data):
        assert self.quant_infer_cold_start, "Hbm Infer only supports cold start."
        num_historical_steps = self.example_data["agent"]["valid_mask"].shape[2]
        num_t2m_steps = self.example_data["agent"]["x_a_his"].shape[2] + 1
        B, A, time_span, D = self.example_data["agent"]["x_a_mid_emb"][0].shape
        num_steps = num_t2m_steps + time_span
        start = num_historical_steps - num_t2m_steps - time_span

        feats = data["agent"]["features"]                  # (B, A, T_hist, F)
        return _qcnet_oe_forward(
            feats, self.params,
            start=start, num_steps=num_steps, time_span=time_span,
            num_his=num_t2m_steps - 1, dim=D, B=B, A=A)


# ----------------------------------------------------------------------------
# Pure-JAX reference (mirrors the original per-step deque loop)
# ----------------------------------------------------------------------------
def reference_forward(feats, params, *, num_historical_steps, num_t2m_steps,
                      time_span, B, A, D):
    hi = lax.Precision.HIGHEST
    cur_step = num_historical_steps - num_t2m_steps - time_span
    zeros = jnp.zeros((B, A, 1, D), jnp.float32)
    mid = deque([zeros] * time_span, maxlen=time_span)
    his = deque([zeros] * (num_t2m_steps - 1), maxlen=num_t2m_steps - 1)
    out = None
    for i in range(num_t2m_steps + time_span):
        cur_step += 1
        x = feats[:, :, cur_step - 1, :].reshape(B * A, -1)
        mid_cat = jnp.concatenate(list(mid), axis=2).reshape(B * A, -1)
        his_cat = jnp.concatenate(list(his), axis=2).reshape(B * A, -1)
        h = jnp.tanh(jnp.dot(x, params["w_in"], precision=hi)
                     + jnp.dot(mid_cat, params["w_mid"], precision=hi)
                     + params["b1"])
        y = jnp.maximum(jnp.dot(h, params["w_cur"], precision=hi)
                        + jnp.dot(his_cat, params["w_his"], precision=hi)
                        + params["b2"], 0.0)
        mid.append(h.reshape(B, A, 1, D))
        his.append(y.reshape(B, A, 1, D))
        if i == num_t2m_steps + time_span - 1:
            out = (jnp.dot(y, params["w_post"], precision=hi)
                   + params["b_post"]).reshape(B, A, -1)
    return out


# ----------------------------------------------------------------------------
# Deterministic parameter construction + driver
# ----------------------------------------------------------------------------
def make_params(F, D, time_span, num_his, K, key):
    ks = jax.random.split(key, 8)
    s = 0.1
    return {
        "w_in":   s * jax.random.normal(ks[0], (F, D), jnp.float32),
        "w_mid":  s * jax.random.normal(ks[1], (time_span * D, D), jnp.float32),
        "w_his":  s * jax.random.normal(ks[2], (num_his * D, D), jnp.float32),
        "w_cur":  s * jax.random.normal(ks[3], (D, D), jnp.float32),
        "b1":     s * jax.random.normal(ks[4], (1, D), jnp.float32),
        "b2":     s * jax.random.normal(ks[5], (1, D), jnp.float32),
        "w_post": s * jax.random.normal(ks[6], (D, K), jnp.float32),
        "b_post": s * jax.random.normal(ks[7], (1, K), jnp.float32),
    }


if __name__ == "__main__":
    # Small shapes consistent with the module's metadata usage.
    B, A = 2, 8                 # batch, num agents  (B*A = 16 rows)
    T_HIST = 16                 # num_historical_steps
    TIME_SPAN = 4               # x_a_mid_emb time span
    NUM_T2M = 5                 # num_t2m_steps  (=> x_a_his has 4 steps)
    F = 32                      # raw agent feature dim
    D = 32                      # embedding dim
    K = 16                      # postprocess output dim

    key = jax.random.PRNGKey(0)
    k_feat, k_param = jax.random.split(key)

    data = {
        "agent": {
            "valid_mask": jnp.ones((B, A, T_HIST), dtype=jnp.bool_),
            "features": jax.random.normal(k_feat, (B, A, T_HIST, F),
                                          jnp.float32),
        }
    }
    example_data = {
        "agent": {
            "valid_mask": jnp.ones((B, A, T_HIST), dtype=jnp.bool_),
            "x_a_his": jnp.zeros((B, A, NUM_T2M - 1, D), jnp.float32),
            "x_a_mid_emb": [jnp.zeros((B, A, TIME_SPAN, D), jnp.float32)],
        }
    }

    params = make_params(F, D, TIME_SPAN, NUM_T2M - 1, K, k_param)
    model = QCNetOEHbmInfer(params, example_data, quant_infer_cold_start=True)

    out = model(data)
    jax.block_until_ready(out)
    assert out.shape == (B, A, K), out.shape
    assert bool(jnp.all(jnp.isfinite(out)))

    # Numerical check against the per-step deque reference (same weights).
    ref = reference_forward(data["agent"]["features"], params,
                            num_historical_steps=T_HIST,
                            num_t2m_steps=NUM_T2M,
                            time_span=TIME_SPAN, B=B, A=A, D=D)
    max_diff = float(jnp.max(jnp.abs(out - ref)))
    assert jnp.allclose(out, ref, atol=2e-2, rtol=2e-2), max_diff

    print("KERNEL_OK")
</pallas_src>

<mosaic_0001>
module attributes {stable_mosaic.version = 11 : i64} {
  func.func @_fused_stream_kernel(%arg0: memref<144x32xf32, #tpu.memory_space<vmem>>, %arg1: memref<32x32xf32, #tpu.memory_space<vmem>>, %arg2: memref<128x32xf32, #tpu.memory_space<vmem>>, %arg3: memref<32x32xf32, #tpu.memory_space<vmem>>, %arg4: memref<128x32xf32, #tpu.memory_space<vmem>>, %arg5: memref<1x32xf32, #tpu.memory_space<vmem>>, %arg6: memref<1x32xf32, #tpu.memory_space<vmem>>, %arg7: memref<32x16xf32, #tpu.memory_space<vmem>>, %arg8: memref<1x16xf32, #tpu.memory_space<vmem>>, %arg9: memref<16x16xf32, #tpu.memory_space<vmem>>, %arg10: memref<144x32xf32, #tpu.memory_space<vmem>>) attributes {dimension_semantics = [], scalar_prefetch = 0 : i64, scratch_operands = 1 : i64, tpu.core_type = #tpu.core_type<tc>} {
    %c0 = arith.constant 0 : index
    %c0_0 = arith.constant 0 : index
    %0 = vector.load %arg0[%c0, %c0_0] : memref<144x32xf32, #tpu.memory_space<vmem>>, vector<144x32xf32>
    %c0_1 = arith.constant 0 : index
    %c0_2 = arith.constant 0 : index
    %1 = vector.load %arg1[%c0_1, %c0_2] : memref<32x32xf32, #tpu.memory_space<vmem>>, vector<32x32xf32>
    %cst = arith.constant dense<0.000000e+00> : vector<144x32xf32>
    %2 = tpu.matmul %0, %1, %cst {dimension_numbers = #tpu.dot_dimension_numbers<[1], [0], [0], [1], [0, 0, 1, 1], [], []>} : vector<144x32xf32>, vector<32x32xf32>, vector<144x32xf32> -> vector<144x32xf32>
    %c0_3 = arith.constant 0 : index
    %c0_4 = arith.constant 0 : index
    %3 = vector.load %arg5[%c0_3, %c0_4] : memref<1x32xf32, #tpu.memory_space<vmem>>, vector<1x32xf32>
    %4 = vector.shape_cast %3 : vector<1x32xf32> to vector<1x32xf32>
    %5 = vector.broadcast %4 : vector<1x32xf32> to vector<144x32xf32>
    %6 = arith.addf %2, %5 : vector<144x32xf32>
    %c0_5 = arith.constant 0 : index
    %c0_6 = arith.constant 0 : index
    %7 = vector.load %arg10[%c0_5, %c0_6] : memref<144x32xf32, #tpu.memory_space<vmem>>, vector<144x32xf32>
    tpu.vector_store %arg10[%c0_5, %c0_6], %6 {strides = array<i32>} : memref<144x32xf32, #tpu.memory_space<vmem>>, vector<144x32xf32>,
    %c0_7 = arith.constant 0 : index
    %c0_8 = arith.constant 0 : index
    %8 = vector.load %arg2[%c0_7, %c0_8] : memref<128x32xf32, #tpu.memory_space<vmem>>, vector<128x32xf32>
    %c0_9 = arith.constant 0 : index
    %c0_10 = arith.constant 0 : index
    %9 = vector.load %arg3[%c0_9, %c0_10] : memref<32x32xf32, #tpu.memory_space<vmem>>, vector<32x32xf32>
    %c0_11 = arith.constant 0 : index
    %c0_12 = arith.constant 0 : index
    %10 = vector.load %arg4[%c0_11, %c0_12] : memref<128x32xf32, #tpu.memory_space<vmem>>, vector<128x32xf32>
    %c0_13 = arith.constant 0 : index
    %c0_14 = arith.constant 0 : index
    %11 = vector.load %arg6[%c0_13, %c0_14] : memref<1x32xf32, #tpu.memory_space<vmem>>, vector<1x32xf32>
    %12 = vector.shape_cast %11 : vector<1x32xf32> to vector<1x32xf32>
    %13 = vector.broadcast %12 : vector<1x32xf32> to vector<16x32xf32>
    %cst_15 = arith.constant 0.000000e+00 : f32
    %14 = vector.broadcast %cst_15 : f32 to vector<16x128xf32>
    %cst_16 = arith.constant 0.000000e+00 : f32
    %15 = vector.broadcast %cst_16 : f32 to vector<16x128xf32>
    %c0_i32 = arith.constant 0 : i32
    %c16_i32 = arith.constant 16 : i32
    %16 = arith.muli %c0_i32, %c16_i32 : i32
    %17 = tpu.assume_multiple %16, 16 : i32
    %18 = arith.index_cast %17 : i32 to index
    %c0_17 = arith.constant 0 : index
    %19 = vector.load %arg10[%18, %c0_17] : memref<144x32xf32, #tpu.memory_space<vmem>>, vector<16x32xf32>
    %cst_18 = arith.constant dense<0.000000e+00> : vector<16x32xf32>
    %20 = tpu.matmul %14, %8, %cst_18 {dimension_numbers = #tpu.dot_dimension_numbers<[1], [0], [0], [1], [0, 0, 1, 1], [], []>} : vector<16x128xf32>, vector<128x32xf32>, vector<16x32xf32> -> vector<16x32xf32>
    %21 = arith.addf %19, %20 : vector<16x32xf32>
    %22 = math.tanh %21 : vector<16x32xf32>
    %cst_19 = arith.constant dense<0.000000e+00> : vector<16x32xf32>
    %23 = tpu.matmul %22, %9, %cst_19 {dimension_numbers = #tpu.dot_dimension_numbers<[1], [0], [0], [1], [0, 0, 1, 1], [], []>} : vector<16x32xf32>, vector<32x32xf32>, vector<16x32xf32> -> vector<16x32xf32>
    %cst_20 = arith.constant dense<0.000000e+00> : vector<16x32xf32>
    %24 = tpu.matmul %15, %10, %cst_20 {dimension_numbers = #tpu.dot_dimension_numbers<[1], [0], [0], [1], [0, 0, 1, 1], [], []>} : vector<16x128xf32>, vector<128x32xf32>, vector<16x32xf32> -> vector<16x32xf32>
    %25 = arith.addf %23, %24 : vector<16x32xf32>
    %26 = arith.addf %25, %13 : vector<16x32xf32>
    %cst_21 = arith.constant 0.000000e+00 : f32
    %27 = vector.broadcast %cst_21 : f32 to vector<16x32xf32>
    %28 = arith.maximumf %26, %27 : vector<16x32xf32>
    %29 = vector.extract_strided_slice %14 {offsets = [0, 32], sizes = [16, 96], strides = [1, 1]} : vector<16x128xf32> to vector<16x96xf32>
    %30 = tpu.concatenate %29, %22 in 1 : vector<16x96xf32>, vector<16x32xf32> -> vector<16x128xf32>
    %31 = vector.extract_strided_slice %15 {offsets = [0, 32], sizes = [16, 96], strides = [1, 1]} : vector<16x128xf32> to vector<16x96xf32>
    %32 = tpu.concatenate %31, %28 in 1 : vector<16x96xf32>, vector<16x32xf32> -> vector<16x128xf32>
    %c1_i32 = arith.constant 1 : i32
    %c16_i32_22 = arith.constant 16 : i32
    %33 = arith.muli %c1_i32, %c16_i32_22 : i32
    %34 = tpu.assume_multiple %33, 16 : i32
    %35 = arith.index_cast %34 : i32 to index
    %c0_23 = arith.constant 0 : index
    %36 = vector.load %arg10[%35, %c0_23] : memref<144x32xf32, #tpu.memory_space<vmem>>, vector<16x32xf32>
    %cst_24 = arith.constant dense<0.000000e+00> : vector<16x32xf32>
    %37 = tpu.matmul %30, %8, %cst_24 {dimension_numbers = #tpu.dot_dimension_numbers<[1], [0], [0], [1], [0, 0, 1, 1], [], []>} : vector<16x128xf32>, vector<128x32xf32>, vector<16x32xf32> -> vector<16x32xf32>
    %38 = arith.addf %36, %37 : vector<16x32xf32>
    %39 = math.tanh %38 : vector<16x32xf32>
    %cst_25 = arith.constant dense<0.000000e+00> : vector<16x32xf32>
    %40 = tpu.matmul %39, %9, %cst_25 {dimension_numbers = #tpu.dot_dimension_numbers<[1], [0], [0], [1], [0, 0, 1, 1], [], []>} : vector<16x32xf32>, vector<32x32xf32>, vector<16x32xf32> -> vector<16x32xf32>
    %cst_26 = arith.constant dense<0.000000e+00> : vector<16x32xf32>
    %41 = tpu.matmul %32, %10, %cst_26 {dimension_numbers = #tpu.dot_dimension_numbers<[1], [0], [0], [1], [0, 0, 1, 1], [], []>} : vector<16x128xf32>, vector<128x32xf32>, vector<16x32xf32> -> vector<16x32xf32>
    %42 = arith.addf %40, %41 : vector<16x32xf32>
    %43 = arith.addf %42, %13 : vector<16x32xf32>
    %cst_27 = arith.constant 0.000000e+00 : f32
    %44 = vector.broadcast %cst_27 : f32 to vector<16x32xf32>
    %45 = arith.maximumf %43, %44 : vector<16x32xf32>
    %46 = vector.extract_strided_slice %30 {offsets = [0, 32], sizes = [16, 96], strides = [1, 1]} : vector<16x128xf32> to vector<16x96xf32>
    %47 = tpu.concatenate %46, %39 in 1 : vector<16x96xf32>, vector<16x32xf32> -> vector<16x128xf32>
    %48 = vector.extract_strided_slice %32 {offsets = [0, 32], sizes = [16, 96], strides = [1, 1]} : vector<16x128xf32> to vector<16x96xf32>
    %49 = tpu.concatenate %48, %45 in 1 : vector<16x96xf32>, vector<16x32xf32> -> vector<16x128xf32>
    %c2_i32 = arith.constant 2 : i32
    %c16_i32_28 = arith.constant 16 : i32
    %50 = arith.muli %c2_i32, %c16_i32_28 : i32
    %51 = tpu.assume_multiple %50, 16 : i32
    %52 = arith.index_cast %51 : i32 to index
    %c0_29 = arith.constant 0 : index
    %53 = vector.load %arg10[%52, %c0_29] : memref<144x32xf32, #tpu.memory_space<vmem>>, vector<16x32xf32>
    %cst_30 = arith.constant dense<0.000000e+00> : vector<16x32xf32>
    %54 = tpu.matmul %47, %8, %cst_30 {dimension_numbers = #tpu.dot_dimension_numbers<[1], [0], [0], [1], [0, 0, 1, 1], [], []>} : vector<16x128xf32>, vector<128x32xf32>, vector<16x32xf32> -> vector<16x32xf32>
    %55 = arith.addf %53, %54 : vector<16x32xf32>
    %56 = math.tanh %55 : vector<16x32xf32>
    %cst_31 = arith.constant dense<0.000000e+00> : vector<16x32xf32>
    %57 = tpu.matmul %56, %9, %cst_31 {dimension_numbers = #tpu.dot_dimension_numbers<[1], [0], [0], [1], [0, 0, 1, 1], [], []>} : vector<16x32xf32>, vector<32x32xf32>, vector<16x32xf32> -> vector<16x32xf32>
    %cst_32 = arith.constant dense<0.000000e+00> : vector<16x32xf32>
    %58 = tpu.matmul %49, %10, %cst_32 {dimension_numbers = #tpu.dot_dimension_numbers<[1], [0], [0], [1], [0, 0, 1, 1], [], []>} : vector<16x128xf32>, vector<128x32xf32>, vector<16x32xf32> -> vector<16x32xf32>
    %59 = arith.addf %57, %58 : vector<16x32xf32>
    %60 = arith.addf %59, %13 : vector<16x32xf32>
    %cst_33 = arith.constant 0.000000e+00 : f32
    %61 = vector.broadcast %cst_33 : f32 to vector<16x32xf32>
    %62 = arith.maximumf %60, %61 : vector<16x32xf32>
    %63 = vector.extract_strided_slice %47 {offsets = [0, 32], sizes = [16, 96], strides = [1, 1]} : vector<16x128xf32> to vector<16x96xf32>
    %64 = tpu.concatenate %63, %56 in 1 : vector<16x96xf32>, vector<16x32xf32> -> vector<16x128xf32>
    %65 = vector.extract_strided_slice %49 {offsets = [0, 32], sizes = [16, 96], strides = [1, 1]} : vector<16x128xf32> to vector<16x96xf32>
    %66 = tpu.concatenate %65, %62 in 1 : vector<16x96xf32>, vector<16x32xf32> -> vector<16x128xf32>
    %c3_i32 = arith.constant 3 : i32
    %c16_i32_34 = arith.constant 16 : i32
    %67 = arith.muli %c3_i32, %c16_i32_34 : i32
    %68 = tpu.assume_multiple %67, 16 : i32
    %69 = arith.index_cast %68 : i32 to index
    %c0_35 = arith.constant 0 : index
    %70 = vector.load %arg10[%69, %c0_35] : memref<144x32xf32, #tpu.memory_space<vmem>>, vector<16x32xf32>
    %cst_36 = arith.constant dense<0.000000e+00> : vector<16x32xf32>
    %71 = tpu.matmul %64, %8, %cst_36 {dimension_numbers = #tpu.dot_dimension_numbers<[1], [0], [0], [1], [0, 0, 1, 1], [], []>} : vector<16x128xf32>, vector<128x32xf32>, vector<16x32xf32> -> vector<16x32xf32>
    %72 = arith.addf %70, %71 : vector<16x32xf32>
    %73 = math.tanh %72 : vector<16x32xf32>
    %cst_37 = arith.constant dense<0.000000e+00> : vector<16x32xf32>
    %74 = tpu.matmul %73, %9, %cst_37 {dimension_numbers = #tpu.dot_dimension_numbers<[1], [0], [0], [1], [0, 0, 1, 1], [], []>} : vector<16x32xf32>, vector<32x32xf32>, vector<16x32xf32> -> vector<16x32xf32>
    %cst_38 = arith.constant dense<0.000000e+00> : vector<16x32xf32>
    %75 = tpu.matmul %66, %10, %cst_38 {dimension_numbers = #tpu.dot_dimension_numbers<[1], [0], [0], [1], [0, 0, 1, 1], [], []>} : vector<16x128xf32>, vector<128x32xf32>, vector<16x32xf32> -> vector<16x32xf32>
    %76 = arith.addf %74, %75 : vector<16x32xf32>
    %77 = arith.addf %76, %13 : vector<16x32xf32>
    %cst_39 = arith.constant 0.000000e+00 : f32
    %78 = vector.broadcast %cst_39 : f32 to vector<16x32xf32>
    %79 = arith.maximumf %77, %78 : vector<16x32xf32>
    %80 = vector.extract_strided_slice %64 {offsets = [0, 32], sizes = [16, 96], strides = [1, 1]} : vector<16x128xf32> to vector<16x96xf32>
    %81 = tpu.concatenate %80, %73 in 1 : vector<16x96xf32>, vector<16x32xf32> -> vector<16x128xf32>
    %82 = vector.extract_strided_slice %66 {offsets = [0, 32], sizes = [16, 96], strides = [1, 1]} : vector<16x128xf32> to vector<16x96xf32>
    %83 = tpu.concatenate %82, %79 in 1 : vector<16x96xf32>, vector<16x32xf32> -> vector<16x128xf32>
    %c4_i32 = arith.constant 4 : i32
    %c16_i32_40 = arith.constant 16 : i32
    %84 = arith.muli %c4_i32, %c16_i32_40 : i32
    %85 = tpu.assume_multiple %84, 16 : i32
    %86 = arith.index_cast %85 : i32 to index
    %c0_41 = arith.constant 0 : index
    %87 = vector.load %arg10[%86, %c0_41] : memref<144x32xf32, #tpu.memory_space<vmem>>, vector<16x32xf32>
    %cst_42 = arith.constant dense<0.000000e+00> : vector<16x32xf32>
    %88 = tpu.matmul %81, %8, %cst_42 {dimension_numbers = #tpu.dot_dimension_numbers<[1], [0], [0], [1], [0, 0, 1, 1], [], []>} : vector<16x128xf32>, vector<128x32xf32>, vector<16x32xf32> -> vector<16x32xf32>
    %89 = arith.addf %87, %88 : vector<16x32xf32>
    %90 = math.tanh %89 : vector<16x32xf32>
    %cst_43 = arith.constant dense<0.000000e+00> : vector<16x32xf32>
    %91 = tpu.matmul %90, %9, %cst_43 {dimension_numbers = #tpu.dot_dimension_numbers<[1], [0], [0], [1], [0, 0, 1, 1], [], []>} : vector<16x32xf32>, vector<32x32xf32>, vector<16x32xf32> -> vector<16x32xf32>
    %cst_44 = arith.constant dense<0.000000e+00> : vector<16x32xf32>
    %92 = tpu.matmul %83, %10, %cst_44 {dimension_numbers = #tpu.dot_dimension_numbers<[1], [0], [0], [1], [0, 0, 1, 1], [], []>} : vector<16x128xf32>, vector<128x32xf32>, vector<16x32xf32> -> vector<16x32xf32>
    %93 = arith.addf %91, %92 : vector<16x32xf32>
    %94 = arith.addf %93, %13 : vector<16x32xf32>
    %cst_45 = arith.constant 0.000000e+00 : f32
    %95 = vector.broadcast %cst_45 : f32 to vector<16x32xf32>
    %96 = arith.maximumf %94, %95 : vector<16x32xf32>
    %97 = vector.extract_strided_slice %81 {offsets = [0, 32], sizes = [16, 96], strides = [1, 1]} : vector<16x128xf32> to vector<16x96xf32>
    %98 = tpu.concatenate %97, %90 in 1 : vector<16x96xf32>, vector<16x32xf32> -> vector<16x128xf32>
    %99 = vector.extract_strided_slice %83 {offsets = [0, 32], sizes = [16, 96], strides = [1, 1]} : vector<16x128xf32> to vector<16x96xf32>
    %100 = tpu.concatenate %99, %96 in 1 : vector<16x96xf32>, vector<16x32xf32> -> vector<16x128xf32>
    %c5_i32 = arith.constant 5 : i32
    %c16_i32_46 = arith.constant 16 : i32
    %101 = arith.muli %c5_i32, %c16_i32_46 : i32
    %102 = tpu.assume_multiple %101, 16 : i32
    %103 = arith.index_cast %102 : i32 to index
    %c0_47 = arith.constant 0 : index
    %104 = vector.load %arg10[%103, %c0_47] : memref<144x32xf32, #tpu.memory_space<vmem>>, vector<16x32xf32>
    %cst_48 = arith.constant dense<0.000000e+00> : vector<16x32xf32>
    %105 = tpu.matmul %98, %8, %cst_48 {dimension_numbers = #tpu.dot_dimension_numbers<[1], [0], [0], [1], [0, 0, 1, 1], [], []>} : vector<16x128xf32>, vector<128x32xf32>, vector<16x32xf32> -> vector<16x32xf32>
    %106 = arith.addf %104, %105 : vector<16x32xf32>
    %107 = math.tanh %106 : vector<16x32xf32>
    %cst_49 = arith.constant dense<0.000000e+00> : vector<16x32xf32>
    %108 = tpu.matmul %107, %9, %cst_49 {dimension_numbers = #tpu.dot_dimension_numbers<[1], [0], [0], [1], [0, 0, 1, 1], [], []>} : vector<16x32xf32>, vector<32x32xf32>, vector<16x32xf32> -> vector<16x32xf32>
    %cst_50 = arith.constant dense<0.000000e+00> : vector<16x32xf32>
    %109 = tpu.matmul %100, %10, %cst_50 {dimension_numbers = #tpu.dot_dimension_numbers<[1], [0], [0], [1], [0, 0, 1, 1], [], []>} : vector<16x128xf32>, vector<128x32xf32>, vector<16x32xf32> -> vector<16x32xf32>
    %110 = arith.addf %108, %109 : vector<16x32xf32>
    %111 = arith.addf %110, %13 : vector<16x32xf32>
    %cst_51 = arith.constant 0.000000e+00 : f32
    %112 = vector.broadcast %cst_51 : f32 to vector<16x32xf32>
    %113 = arith.maximumf %111, %112 : vector<16x32xf32>
    %114 = vector.extract_strided_slice %98 {offsets = [0, 32], sizes = [16, 96], strides = [1, 1]} : vector<16x128xf32> to vector<16x96xf32>
    %115 = tpu.concatenate %114, %107 in 1 : vector<16x96xf32>, vector<16x32xf32> -> vector<16x128xf32>
    %116 = vector.extract_strided_slice %100 {offsets = [0, 32], sizes = [16, 96], strides = [1, 1]} : vector<16x128xf32> to vector<16x96xf32>
    %117 = tpu.concatenate %116, %113 in 1 : vector<16x96xf32>, vector<16x32xf32> -> vector<16x128xf32>
    %c6_i32 = arith.constant 6 : i32
    %c16_i32_52 = arith.constant 16 : i32
    %118 = arith.muli %c6_i32, %c16_i32_52 : i32
    %119 = tpu.assume_multiple %118, 16 : i32
    %120 = arith.index_cast %119 : i32 to index
    %c0_53 = arith.constant 0 : index
    %121 = vector.load %arg10[%120, %c0_53] : memref<144x32xf32, #tpu.memory_space<vmem>>, vector<16x32xf32>
    %cst_54 = arith.constant dense<0.000000e+00> : vector<16x32xf32>
    %122 = tpu.matmul %115, %8, %cst_54 {dimension_numbers = #tpu.dot_dimension_numbers<[1], [0], [0], [1], [0, 0, 1, 1], [], []>} : vector<16x128xf32>, vector<128x32xf32>, vector<16x32xf32> -> vector<16x32xf32>
    %123 = arith.addf %121, %122 : vector<16x32xf32>
    %124 = math.tanh %123 : vector<16x32xf32>
    %cst_55 = arith.constant dense<0.000000e+00> : vector<16x32xf32>
    %125 = tpu.matmul %124, %9, %cst_55 {dimension_numbers = #tpu.dot_dimension_numbers<[1], [0], [0], [1], [0, 0, 1, 1], [], []>} : vector<16x32xf32>, vector<32x32xf32>, vector<16x32xf32> -> vector<16x32xf32>
    %cst_56 = arith.constant dense<0.000000e+00> : vector<16x32xf32>
    %126 = tpu.matmul %117, %10, %cst_56 {dimension_numbers = #tpu.dot_dimension_numbers<[1], [0], [0], [1], [0, 0, 1, 1], [], []>} : vector<16x128xf32>, vector<128x32xf32>, vector<16x32xf32> -> vector<16x32xf32>
    %127 = arith.addf %125, %126 : vector<16x32xf32>
    %128 = arith.addf %127, %13 : vector<16x32xf32>
    %cst_57 = arith.constant 0.000000e+00 : f32
    %129 = vector.broadcast %cst_57 : f32 to vector<16x32xf32>
    %130 = arith.maximumf %128, %129 : vector<16x32xf32>
    %131 = vector.extract_strided_slice %115 {offsets = [0, 32], sizes = [16, 96], strides = [1, 1]} : vector<16x128xf32> to vector<16x96xf32>
    %132 = tpu.concatenate %131, %124 in 1 : vector<16x96xf32>, vector<16x32xf32> -> vector<16x128xf32>
    %133 = vector.extract_strided_slice %117 {offsets = [0, 32], sizes = [16, 96], strides = [1, 1]} : vector<16x128xf32> to vector<16x96xf32>
    %134 = tpu.concatenate %133, %130 in 1 : vector<16x96xf32>, vector<16x32xf32> -> vector<16x128xf32>
    %c7_i32 = arith.constant 7 : i32
    %c16_i32_58 = arith.constant 16 : i32
    %135 = arith.muli %c7_i32, %c16_i32_58 : i32
    %136 = tpu.assume_multiple %135, 16 : i32
    %137 = arith.index_cast %136 : i32 to index
    %c0_59 = arith.constant 0 : index
    %138 = vector.load %arg10[%137, %c0_59] : memref<144x32xf32, #tpu.memory_space<vmem>>, vector<16x32xf32>
    %cst_60 = arith.constant dense<0.000000e+00> : vector<16x32xf32>
    %139 = tpu.matmul %132, %8, %cst_60 {dimension_numbers = #tpu.dot_dimension_numbers<[1], [0], [0], [1], [0, 0, 1, 1], [], []>} : vector<16x128xf32>, vector<128x32xf32>, vector<16x32xf32> -> vector<16x32xf32>
    %140 = arith.addf %138, %139 : vector<16x32xf32>
    %141 = math.tanh %140 : vector<16x32xf32>
    %cst_61 = arith.constant dense<0.000000e+00> : vector<16x32xf32>
    %142 = tpu.matmul %141, %9, %cst_61 {dimension_numbers = #tpu.dot_dimension_numbers<[1], [0], [0], [1], [0, 0, 1, 1], [], []>} : vector<16x32xf32>, vector<32x32xf32>, vector<16x32xf32> -> vector<16x32xf32>
    %cst_62 = arith.constant dense<0.000000e+00> : vector<16x32xf32>
    %143 = tpu.matmul %134, %10, %cst_62 {dimension_numbers = #tpu.dot_dimension_numbers<[1], [0], [0], [1], [0, 0, 1, 1], [], []>} : vector<16x128xf32>, vector<128x32xf32>, vector<16x32xf32> -> vector<16x32xf32>
    %144 = arith.addf %142, %143 : vector<16x32xf32>
    %145 = arith.addf %144, %13 : vector<16x32xf32>
    %cst_63 = arith.constant 0.000000e+00 : f32
    %146 = vector.broadcast %cst_63 : f32 to vector<16x32xf32>
    %147 = arith.maximumf %145, %146 : vector<16x32xf32>
    %148 = vector.extract_strided_slice %132 {offsets = [0, 32], sizes = [16, 96], strides = [1, 1]} : vector<16x128xf32> to vector<16x96xf32>
    %149 = tpu.concatenate %148, %141 in 1 : vector<16x96xf32>, vector<16x32xf32> -> vector<16x128xf32>
    %150 = vector.extract_strided_slice %134 {offsets = [0, 32], sizes = [16, 96], strides = [1, 1]} : vector<16x128xf32> to vector<16x96xf32>
    %151 = tpu.concatenate %150, %147 in 1 : vector<16x96xf32>, vector<16x32xf32> -> vector<16x128xf32>
    %c8_i32 = arith.constant 8 : i32
    %c16_i32_64 = arith.constant 16 : i32
    %152 = arith.muli %c8_i32, %c16_i32_64 : i32
    %153 = tpu.assume_multiple %152, 16 : i32
    %154 = arith.index_cast %153 : i32 to index
    %c0_65 = arith.constant 0 : index
    %155 = vector.load %arg10[%154, %c0_65] : memref<144x32xf32, #tpu.memory_space<vmem>>, vector<16x32xf32>
    %cst_66 = arith.constant dense<0.000000e+00> : vector<16x32xf32>
    %156 = tpu.matmul %149, %8, %cst_66 {dimension_numbers = #tpu.dot_dimension_numbers<[1], [0], [0], [1], [0, 0, 1, 1], [], []>} : vector<16x128xf32>, vector<128x32xf32>, vector<16x32xf32> -> vector<16x32xf32>
    %157 = arith.addf %155, %156 : vector<16x32xf32>
    %158 = math.tanh %157 : vector<16x32xf32>
    %cst_67 = arith.constant dense<0.000000e+00> : vector<16x32xf32>
    %159 = tpu.matmul %158, %9, %cst_67 {dimension_numbers = #tpu.dot_dimension_numbers<[1], [0], [0], [1], [0, 0, 1, 1], [], []>} : vector<16x32xf32>, vector<32x32xf32>, vector<16x32xf32> -> vector<16x32xf32>
    %cst_68 = arith.constant dense<0.000000e+00> : vector<16x32xf32>
    %160 = tpu.matmul %151, %10, %cst_68 {dimension_numbers = #tpu.dot_dimension_numbers<[1], [0], [0], [1], [0, 0, 1, 1], [], []>} : vector<16x128xf32>, vector<128x32xf32>, vector<16x32xf32> -> vector<16x32xf32>
    %161 = arith.addf %159, %160 : vector<16x32xf32>
    %162 = arith.addf %161, %13 : vector<16x32xf32>
    %cst_69 = arith.constant 0.000000e+00 : f32
    %163 = vector.broadcast %cst_69 : f32 to vector<16x32xf32>
    %164 = arith.maximumf %162, %163 : vector<16x32xf32>
    %165 = vector.extract_strided_slice %149 {offsets = [0, 32], sizes = [16, 96], strides = [1, 1]} : vector<16x128xf32> to vector<16x96xf32>
    %166 = tpu.concatenate %165, %158 in 1 : vector<16x96xf32>, vector<16x32xf32> -> vector<16x128xf32>
    %167 = vector.extract_strided_slice %151 {offsets = [0, 32], sizes = [16, 96], strides = [1, 1]} : vector<16x128xf32> to vector<16x96xf32>
    %168 = tpu.concatenate %167, %164 in 1 : vector<16x96xf32>, vector<16x32xf32> -> vector<16x128xf32>
    %c9_i32 = arith.constant 9 : i32
    %169 = vector.extract_strided_slice %168 {offsets = [0, 96], sizes = [16, 32], strides = [1, 1]} : vector<16x128xf32> to vector<16x32xf32>
    %c0_70 = arith.constant 0 : index
    %c0_71 = arith.constant 0 : index
    %170 = vector.load %arg7[%c0_70, %c0_71] : memref<32x16xf32, #tpu.memory_space<vmem>>, vector<32x16xf32>
    %cst_72 = arith.constant dense<0.000000e+00> : vector<16x16xf32>
    %171 = tpu.matmul %169, %170, %cst_72 {dimension_numbers = #tpu.dot_dimension_numbers<[1], [0], [0], [1], [0, 0, 1, 1], [], []>} : vector<16x32xf32>, vector<32x16xf32>, vector<16x16xf32> -> vector<16x16xf32>
    %c0_73 = arith.constant 0 : index
    %c0_74 = arith.constant 0 : index
    %172 = vector.load %arg8[%c0_73, %c0_74] : memref<1x16xf32, #tpu.memory_space<vmem>>, vector<1x16xf32>
    %173 = vector.shape_cast %172 : vector<1x16xf32> to vector<1x16xf32>
    %174 = vector.broadcast %173 : vector<1x16xf32> to vector<16x16xf32>
    %175 = arith.addf %171, %174 : vector<16x16xf32>
    %c0_75 = arith.constant 0 : index
    %c0_76 = arith.constant 0 : index
    %176 = vector.load %arg9[%c0_75, %c0_76] : memref<16x16xf32, #tpu.memory_space<vmem>>, vector<16x16xf32>
    tpu.vector_store %arg9[%c0_75, %c0_76], %175 {strides = array<i32>} : memref<16x16xf32, #tpu.memory_space<vmem>>, vector<16x16xf32>,
    return
  }
}

</mosaic_0001>

<llo_original>
// kernel: _qcnet_oe_forward.1
$region0: #{_qcnet_oe_forward.1}
  #allocation0 [shape = 'u32[]', space=smem, size = 0x4, offset = 0x4, fixed_abs, tag = 'smem constant byte address 0x4 - core index']
  #allocation1 [shape = 'u32[72,128]{1,0:T(1,128)}', space=vmem, size = 0x9000, scoped, tag = 'internal scratch']
  #allocation2 [shape = 'f32[144,32]{1,0:T(8,128)}', space=vmem, size = 0x12000, scoped, tag = 'scratch operand']
  %s0 = inlined_call_operand.vmem [shape: f32[144,32], index: 0, kind: input, shape index: {}]
  %s1 = inlined_call_operand.vmem [shape: f32[32,32], index: 1, kind: input, shape index: {}]
  %s2 = inlined_call_operand.vmem [shape: f32[128,32], index: 2, kind: input, shape index: {}]
  %s3 = inlined_call_operand.vmem [shape: f32[32,32], index: 3, kind: input, shape index: {}]
  %s4 = inlined_call_operand.vmem [shape: f32[128,32], index: 4, kind: input, shape index: {}]
  %s5 = inlined_call_operand.vmem [shape: f32[1,32], index: 5, kind: input, shape index: {}]
  %s6 = inlined_call_operand.vmem [shape: f32[1,32], index: 6, kind: input, shape index: {}]
  %s7 = inlined_call_operand.vmem [shape: f32[32,16], index: 7, kind: input, shape index: {}]
  %s8 = inlined_call_operand.vmem [shape: f32[1,16], index: 8, kind: input, shape index: {}]
  %s9 = inlined_call_operand.hbm [shape: f32[16,16], index: 9, kind: output, shape index: {}]
  %s10 = sld [smem:[#allocation0]]
  $region46: #{_qcnet_oe_forward.1} parent=0
    _
  %s12 = ssub.s32 1, %s10
  %s13 = scalar_select 0, %s12, %s10
  $region1: #{_qcnet_oe_forward.1} parent=0
    #allocation3 [shape = 'u8[8192]{0}', space=vmem, size = 0x2000, scoped, tag = 'output window, operand 0, single buffered']
    #allocation4 [shape = 's32[1]{0}', space=sflag, size = 0x4, scoped, tag = 'scoped memory for _qcnet_oe_forward.1']
    %14 = vsyncpa [#allocation4], 0
    // Predicated region
    $region2: #{_qcnet_oe_forward.1} parent=1 // pred_check
      _
    $region3: #{_qcnet_oe_forward.1} parent=1 // pred_check_branch
      %16 = sbr.rel (0) target = $region5
    $region4: #{_qcnet_oe_forward.1} parent=1 // pred_region
      _
    $region5: #{_qcnet_oe_forward.1} parent=1 // pred_fallthru
      _
    // Predicated region
    $region6: #{_qcnet_oe_forward.1} parent=1 // pred_check
      _
    $region7: #{_qcnet_oe_forward.1} parent=1 // pred_check_branch
      %18 = sbr.rel (0) target = $region9
    $region8: #{_qcnet_oe_forward.1} parent=1 // pred_region
      _
    $region9: #{_qcnet_oe_forward.1} parent=1 // pred_fallthru
      _
    // Predicated region
    $region10: #{_qcnet_oe_forward.1} parent=1 // pred_check
      _
    $region11: #{_qcnet_oe_forward.1} parent=1 // pred_check_branch
      %20 = sbr.rel (0) target = $region13
    $region12: #{_qcnet_oe_forward.1} parent=1 // pred_region
      _
    $region13: #{_qcnet_oe_forward.1} parent=1 // pred_fallthru
      _
    // Predicated region
    $region14: #{_qcnet_oe_forward.1} parent=1 // pred_check
      _
    $region15: #{_qcnet_oe_forward.1} parent=1 // pred_check_branch
      %22 = sbr.rel (0) target = $region17
    $region16: #{_qcnet_oe_forward.1} parent=1 // pred_region
      _
    $region17: #{_qcnet_oe_forward.1} parent=1 // pred_fallthru
      _
    // Predicated region
    $region18: #{_qcnet_oe_forward.1} parent=1 // pred_check
      _
    $region19: #{_qcnet_oe_forward.1} parent=1 // pred_check_branch
      %24 = sbr.rel (0) target = $region21
    $region20: #{_qcnet_oe_forward.1} parent=1 // pred_region
      _
    $region21: #{_qcnet_oe_forward.1} parent=1 // pred_fallthru
      _
    // Predicated region
    $region22: #{_qcnet_oe_forward.1} parent=1 // pred_check
      _
    $region23: #{_qcnet_oe_forward.1} parent=1 // pred_check_branch
      %26 = sbr.rel (0) target = $region25
    $region24: #{_qcnet_oe_forward.1} parent=1 // pred_region
      _
    $region25: #{_qcnet_oe_forward.1} parent=1 // pred_fallthru
      _
    // Predicated region
    $region26: #{_qcnet_oe_forward.1} parent=1 // pred_check
      _
    $region27: #{_qcnet_oe_forward.1} parent=1 // pred_check_branch
      %28 = sbr.rel (0) target = $region29
    $region28: #{_qcnet_oe_forward.1} parent=1 // pred_region
      _
    $region29: #{_qcnet_oe_forward.1} parent=1 // pred_fallthru
      _
    // Predicated region
    $region30: #{_qcnet_oe_forward.1} parent=1 // pred_check
      _
    $region31: #{_qcnet_oe_forward.1} parent=1 // pred_check_branch
      %30 = sbr.rel (0) target = $region33
    $region32: #{_qcnet_oe_forward.1} parent=1 // pred_region
      _
    $region33: #{_qcnet_oe_forward.1} parent=1 // pred_fallthru
      _
    // Predicated region
    $region34: #{_qcnet_oe_forward.1} parent=1 // pred_check
      _
    $region35: #{_qcnet_oe_forward.1} parent=1 // pred_check_branch
      %32 = sbr.rel (0) target = $region37
    $region36: #{_qcnet_oe_forward.1} parent=1 // pred_region
      _
    $region37: #{_qcnet_oe_forward.1} parent=1 // pred_fallthru
      _
    %v33 = vld [vmem:[%s0] sm:$0xff]
    %v34 = vld [vmem:[%s0 + $0x8] sm:$0xff]
    %v35 = vld [vmem:[%s0 + $0x10] sm:$0xff]
    %v36 = vld [vmem:[%s0 + $0x18] sm:$0xff]
    %v37 = vld [vmem:[%s0 + $0x20] sm:$0xff]
    %v38 = vld [vmem:[%s0 + $0x28] sm:$0xff]
    %v39 = vld [vmem:[%s0 + $0x30] sm:$0xff]
    %v40 = vld [vmem:[%s0 + $0x38] sm:$0xff]
    %v41 = vld [vmem:[%s0 + $0x40] sm:$0xff]
    %v42 = vld [vmem:[%s0 + $0x48] sm:$0xff]
    %v43 = vld [vmem:[%s0 + $0x50] sm:$0xff]
    %v44 = vld [vmem:[%s0 + $0x58] sm:$0xff]
    %v45 = vld [vmem:[%s0 + $0x60] sm:$0xff]
    %v46 = vld [vmem:[%s0 + $0x68] sm:$0xff]
    %v47 = vld [vmem:[%s0 + $0x70] sm:$0xff]
    %v48 = vld [vmem:[%s0 + $0x78] sm:$0xff]
    %v49 = vld [vmem:[%s0 + $0x80] sm:$0xff]
    %v50 = vld [vmem:[%s0 + $0x88] sm:$0xff]
    %v51 = vld [vmem:[%s1] sm:$0xff]
    %v52 = vld [vmem:[%s1 + $0x8] sm:$0xff]
    %v53 = vld [vmem:[%s1 + $0x10] sm:$0xff]
    %v54 = vld [vmem:[%s1 + $0x18] sm:$0xff]
    %v55 = vld [vmem:[%s5] sm:$0x1]
    %v57 = vperm.slane %v55, 0
    %vm59 = vcmask 261120
    %v61 = vsel %vm59, %v33, 0
    %v64 = vsel %vm59, %v34, 0
    %v67 = vsel %vm59, %v35, 0
    %v70 = vsel %vm59, %v36, 0
    %v73 = vsel %vm59, %v37, 0
    %v76 = vsel %vm59, %v38, 0
    %v79 = vsel %vm59, %v39, 0
    %v82 = vsel %vm59, %v40, 0
    %v85 = vsel %vm59, %v41, 0
    %v88 = vsel %vm59, %v42, 0
    %v91 = vsel %vm59, %v43, 0
    %v94 = vsel %vm59, %v44, 0
    %v97 = vsel %vm59, %v45, 0
    %v100 = vsel %vm59, %v46, 0
    %v103 = vsel %vm59, %v47, 0
    %v106 = vsel %vm59, %v48, 0
    %v109 = vsel %vm59, %v49, 0
    %v112 = vsel %vm59, %v50, 0
    %114 = vmatpush.msra.mxu0 0.0
    %115 = vmatpush.msra.mxu0 0.0
    %116 = vmatpush.msra.mxu0 0.0
    %117 = vmatpush.msra.mxu0 0.0
    %118 = vmatpush.msra.mxu0 0.0
    %119 = vmatpush.msra.mxu0 0.0
    %120 = vmatpush.msra.mxu0 0.0
    %121 = vmatpush.msra.mxu0 0.0
    %122 = vmatpush.msra.mxu0 0.0
    %123 = vmatpush.msra.mxu0 0.0
    %124 = vmatpush.msra.mxu0 0.0
    %125 = vmatpush.msra.mxu0 0.0
    %126 = vmatpush.msra.mxu0 %v54
    %127 = vmatpush.msra.mxu0 %v53
    %128 = vmatpush.msra.mxu0 %v52
    %129 = vmatpush.msra.mxu0 %v51
    %130 = vmatmul.f32.gmra.mxu0 %v61
    %v131 = vpop.f32.mrf.mxu0
    %v132 = vadd.f32 %v57, %v131
    %133 = vmatmul.f32.gmra.mxu0 %v64
    %v134 = vpop.f32.mrf.mxu0
    %v135 = vadd.f32 %v57, %v134
    %136 = vmatmul.f32.gmra.mxu0 %v67
    %v137 = vpop.f32.mrf.mxu0
    %v138 = vadd.f32 %v57, %v137
    %139 = vmatmul.f32.gmra.mxu0 %v70
    %v140 = vpop.f32.mrf.mxu0
    %v141 = vadd.f32 %v57, %v140
    %142 = vmatmul.f32.gmra.mxu0 %v73
    %v143 = vpop.f32.mrf.mxu0
    %v144 = vadd.f32 %v57, %v143
    %145 = vmatmul.f32.gmra.mxu0 %v76
    %v146 = vpop.f32.mrf.mxu0
    %v147 = vadd.f32 %v57, %v146
    %148 = vmatmul.f32.gmra.mxu0 %v79
    %v149 = vpop.f32.mrf.mxu0
    %v150 = vadd.f32 %v57, %v149
    %151 = vmatmul.f32.gmra.mxu0 %v82
    %v152 = vpop.f32.mrf.mxu0
    %v153 = vadd.f32 %v57, %v152
    %154 = vmatmul.f32.gmra.mxu0 %v85
    %v155 = vpop.f32.mrf.mxu0
    %v156 = vadd.f32 %v57, %v155
    %157 = vmatmul.f32.gmra.mxu0 %v88
    %v158 = vpop.f32.mrf.mxu0
    %v159 = vadd.f32 %v57, %v158
    %160 = vmatmul.f32.gmra.mxu0 %v91
    %v161 = vpop.f32.mrf.mxu0
    %v162 = vadd.f32 %v57, %v161
    %163 = vmatmul.f32.gmra.mxu0 %v94
    %v164 = vpop.f32.mrf.mxu0
    %v165 = vadd.f32 %v57, %v164
    %166 = vmatmul.f32.gmra.mxu0 %v97
    %v167 = vpop.f32.mrf.mxu0
    %v168 = vadd.f32 %v57, %v167
    %169 = vmatmul.f32.gmra.mxu0 %v100
    %v170 = vpop.f32.mrf.mxu0
    %v171 = vadd.f32 %v57, %v170
    %172 = vmatmul.f32.gmra.mxu0 %v103
    %v173 = vpop.f32.mrf.mxu0
    %v174 = vadd.f32 %v57, %v173
    %175 = vmatmul.f32.gmra.mxu0 %v106
    %v176 = vpop.f32.mrf.mxu0
    %v177 = vadd.f32 %v57, %v176
    %178 = vmatmul.f32.gmra.mxu0 %v109
    %v179 = vpop.f32.mrf.mxu0
    %v180 = vadd.f32 %v57, %v179
    %181 = vmatmul.f32.gmra.mxu0 %v112
    %v182 = vpop.f32.mrf.mxu0
    %v183 = vadd.f32 %v57, %v182
    %184 = vdwg.mxu0
    %185 = vst.msk [vmem:[#allocation2] sm:$0xff] %vm59, %v132
    %186 = vst.msk [vmem:[#allocation2 + $0x8] sm:$0xff] %vm59, %v135
    %187 = vst.msk [vmem:[#allocation2 + $0x10] sm:$0xff] %vm59, %v138
    %188 = vst.msk [vmem:[#allocation2 + $0x18] sm:$0xff] %vm59, %v141
    %189 = vst.msk [vmem:[#allocation2 + $0x20] sm:$0xff] %vm59, %v144
    %190 = vst.msk [vmem:[#allocation2 + $0x28] sm:$0xff] %vm59, %v147
    %191 = vst.msk [vmem:[#allocation2 + $0x30] sm:$0xff] %vm59, %v150
    %192 = vst.msk [vmem:[#allocation2 + $0x38] sm:$0xff] %vm59, %v153
    %193 = vst.msk [vmem:[#allocation2 + $0x40] sm:$0xff] %vm59, %v156
    %194 = vst.msk [vmem:[#allocation2 + $0x48] sm:$0xff] %vm59, %v159
    %195 = vst.msk [vmem:[#allocation2 + $0x50] sm:$0xff] %vm59, %v162
    %196 = vst.msk [vmem:[#allocation2 + $0x58] sm:$0xff] %vm59, %v165
    %197 = vst.msk [vmem:[#allocation2 + $0x60] sm:$0xff] %vm59, %v168
    %198 = vst.msk [vmem:[#allocation2 + $0x68] sm:$0xff] %vm59, %v171
    %199 = vst.msk [vmem:[#allocation2 + $0x70] sm:$0xff] %vm59, %v174
    %200 = vst.msk [vmem:[#allocation2 + $0x78] sm:$0xff] %vm59, %v177
    %201 = vst.msk [vmem:[#allocation2 + $0x80] sm:$0xff] %vm59, %v180
    %202 = vst.msk [vmem:[#allocation2 + $0x88] sm:$0xff] %vm59, %v183
    %v203 = vld [vmem:[%s2] sm:$0xff]
    %v204 = vld [vmem:[%s2 + $0x8] sm:$0xff]
    %v205 = vld [vmem:[%s2 + $0x10] sm:$0xff]
    %v206 = vld [vmem:[%s2 + $0x18] sm:$0xff]
    %v207 = vld [vmem:[%s2 + $0x20] sm:$0xff]
    %v208 = vld [vmem:[%s2 + $0x28] sm:$0xff]
    %v209 = vld [vmem:[%s2 + $0x30] sm:$0xff]
    %v210 = vld [vmem:[%s2 + $0x38] sm:$0xff]
    %v211 = vld [vmem:[%s2 + $0x40] sm:$0xff]
    %v212 = vld [vmem:[%s2 + $0x48] sm:$0xff]
    %v213 = vld [vmem:[%s2 + $0x50] sm:$0xff]
    %v214 = vld [vmem:[%s2 + $0x58] sm:$0xff]
    %v215 = vld [vmem:[%s2 + $0x60] sm:$0xff]
    %v216 = vld [vmem:[%s2 + $0x68] sm:$0xff]
    %v217 = vld [vmem:[%s2 + $0x70] sm:$0xff]
    %v218 = vld [vmem:[%s2 + $0x78] sm:$0xff]
    %v219 = vld [vmem:[%s3] sm:$0xff]
    %v220 = vld [vmem:[%s3 + $0x8] sm:$0xff]
    %v221 = vld [vmem:[%s3 + $0x10] sm:$0xff]
    %v222 = vld [vmem:[%s3 + $0x18] sm:$0xff]
    %v223 = vld [vmem:[%s4] sm:$0xff]
    %v224 = vld [vmem:[%s4 + $0x8] sm:$0xff]
    %v225 = vld [vmem:[%s4 + $0x10] sm:$0xff]
    %v226 = vld [vmem:[%s4 + $0x18] sm:$0xff]
    %v227 = vld [vmem:[%s4 + $0x20] sm:$0xff]
    %v228 = vld [vmem:[%s4 + $0x28] sm:$0xff]
    %v229 = vld [vmem:[%s4 + $0x30] sm:$0xff]
    %v230 = vld [vmem:[%s4 + $0x38] sm:$0xff]
    %v231 = vld [vmem:[%s4 + $0x40] sm:$0xff]
    %v232 = vld [vmem:[%s4 + $0x48] sm:$0xff]
    %v233 = vld [vmem:[%s4 + $0x50] sm:$0xff]
    %v234 = vld [vmem:[%s4 + $0x58] sm:$0xff]
    %v235 = vld [vmem:[%s4 + $0x60] sm:$0xff]
    %v236 = vld [vmem:[%s4 + $0x68] sm:$0xff]
    %v237 = vld [vmem:[%s4 + $0x70] sm:$0xff]
    %v238 = vld [vmem:[%s4 + $0x78] sm:$0xff]
    %v239 = vld [vmem:[%s6] sm:$0x1]
    %v241 = vperm.slane %v239, 0
    %v243 = vld [vmem:[#allocation2] sm:$0xff]
    %v244 = vld [vmem:[#allocation2 + $0x8] sm:$0xff]
    %245 = vmatpush.msra.mxu0 %v218
    %246 = vmatpush.msra.mxu0 %v217
    %247 = vmatpush.msra.mxu0 %v216
    %248 = vmatpush.msra.mxu0 %v215
    %249 = vmatpush.msra.mxu0 %v214
    %250 = vmatpush.msra.mxu0 %v213
    %251 = vmatpush.msra.mxu0 %v212
    %252 = vmatpush.msra.mxu0 %v211
    %253 = vmatpush.msra.mxu0 %v210
    %254 = vmatpush.msra.mxu0 %v209
    %255 = vmatpush.msra.mxu0 %v208
    %256 = vmatpush.msra.mxu0 %v207
    %257 = vmatpush.msra.mxu0 %v206
    %258 = vmatpush.msra.mxu0 %v205
    %259 = vmatpush.msra.mxu0 %v204
    %260 = vmatpush.msra.mxu0 %v203
    %261 = vmatmul.f32.gmra.mxu0 0.0
    %v262 = vpop.f32.mrf.mxu0
    %v263 = vadd.f32 0.0, %v262
    %264 = vmatmul.f32.gmra.mxu0 0.0
    %v265 = vpop.f32.mrf.mxu0
    %v266 = vadd.f32 0.0, %v265
    %267 = vdwg.mxu0
    %v268 = vadd.f32 %v243, %v263
    %v269 = vadd.f32 %v244, %v266
    %v270 = vtanh.pop %v268
    %v271 = vtanh.pop %v269
    %272 = vmatpush.msra.mxu0 %v238
    %273 = vmatpush.msra.mxu0 %v237
    %274 = vmatpush.msra.mxu0 %v236
    %275 = vmatpush.msra.mxu0 %v235
    %276 = vmatpush.msra.mxu0 %v234
    %277 = vmatpush.msra.mxu0 %v233
    %278 = vmatpush.msra.mxu0 %v232
    %279 = vmatpush.msra.mxu0 %v231
    %280 = vmatpush.msra.mxu0 %v230
    %281 = vmatpush.msra.mxu0 %v229
    %282 = vmatpush.msra.mxu0 %v228
    %283 = vmatpush.msra.mxu0 %v227
    %284 = vmatpush.msra.mxu0 %v226
    %285 = vmatpush.msra.mxu0 %v225
    %286 = vmatpush.msra.mxu0 %v224
    %287 = vmatpush.msra.mxu0 %v223
    %288 = vmatmul.f32.gmra.mxu0 0.0
    %v289 = vpop.f32.mrf.mxu0
    %v290 = vadd.f32 0.0, %v289
    %291 = vmatmul.f32.gmra.mxu0 0.0
    %v292 = vpop.f32.mrf.mxu0
    %v293 = vadd.f32 0.0, %v292
    %294 = vdwg.mxu0
    %v296 = vsel %vm59, %v270, 0
    %v299 = vsel %vm59, %v271, 0
    %301 = vmatpush.msra.mxu0 0.0
    %302 = vmatpush.msra.mxu0 0.0
    %303 = vmatpush.msra.mxu0 0.0
    %304 = vmatpush.msra.mxu0 0.0
    %305 = vmatpush.msra.mxu0 0.0
    %306 = vmatpush.msra.mxu0 0.0
    %307 = vmatpush.msra.mxu0 0.0
    %308 = vmatpush.msra.mxu0 0.0
    %309 = vmatpush.msra.mxu0 0.0
    %310 = vmatpush.msra.mxu0 0.0
    %311 = vmatpush.msra.mxu0 0.0
    %312 = vmatpush.msra.mxu0 0.0
    %313 = vmatpush.msra.mxu0 %v222
    %314 = vmatpush.msra.mxu0 %v221
    %315 = vmatpush.msra.mxu0 %v220
    %316 = vmatpush.msra.mxu0 %v219
    %317 = vmatmul.f32.gmra.mxu0 %v296
    %v318 = vpop.f32.mrf.mxu0
    %v319 = vadd.f32 %v290, %v318
    %320 = vmatmul.f32.gmra.mxu0 %v299
    %v321 = vpop.f32.mrf.mxu0
    %v322 = vadd.f32 %v293, %v321
    %323 = vdwg.mxu0
    %v324 = vadd.f32 %v319, %v241
    %v325 = vadd.f32 %v322, %v241
    %v326 = vmax.f32 %v324, 0.0
    %v327 = vmax.f32 %v325, 0.0
    %328 = vrot.lane.b32.xlu0 %v270, 96
    %v329 = vpop.permute.xlu0 %328
    %330 = vrot.lane.b32.xlu0 %v271, 96
    %v331 = vpop.permute.xlu0 %330
    %vm334 = vcmask 785408
    %v335 = vsel %vm334, 0.0, %v329
    %v336 = vsel %vm334, 0.0, %v331
    %339 = vrot.lane.b32.xlu0 %v326, 96
    %v340 = vpop.permute.xlu0 %339
    %341 = vrot.lane.b32.xlu0 %v327, 96
    %v342 = vpop.permute.xlu0 %341
    %v345 = vsel %vm334, 0.0, %v340
    %v346 = vsel %vm334, 0.0, %v342
    %s347 = scalar_lea.vmem [#allocation2], 16
    %v348 = vld [vmem:[%s347] sm:$0xff]
    %v349 = vld [vmem:[%s347 + $0x8] sm:$0xff]
    %350 = vmatpush.msra.mxu0 %v218
    %351 = vmatpush.msra.mxu0 %v217
    %352 = vmatpush.msra.mxu0 %v216
    %353 = vmatpush.msra.mxu0 %v215
    %354 = vmatpush.msra.mxu0 %v214
    %355 = vmatpush.msra.mxu0 %v213
    %356 = vmatpush.msra.mxu0 %v212
    %357 = vmatpush.msra.mxu0 %v211
    %358 = vmatpush.msra.mxu0 %v210
    %359 = vmatpush.msra.mxu0 %v209
    %360 = vmatpush.msra.mxu0 %v208
    %361 = vmatpush.msra.mxu0 %v207
    %362 = vmatpush.msra.mxu0 %v206
    %363 = vmatpush.msra.mxu0 %v205
    %364 = vmatpush.msra.mxu0 %v204
    %365 = vmatpush.msra.mxu0 %v203
    %366 = vmatmul.f32.gmra.mxu0 %v335
    %v367 = vpop.f32.mrf.mxu0
    %v368 = vadd.f32 0.0, %v367
    %369 = vmatmul.f32.gmra.mxu0 %v336
    %v370 = vpop.f32.mrf.mxu0
    %v371 = vadd.f32 0.0, %v370
    %372 = vdwg.mxu0
    %v373 = vadd.f32 %v348, %v368
    %v374 = vadd.f32 %v349, %v371
    %v375 = vtanh.pop %v373
    %v376 = vtanh.pop %v374
    %377 = vmatpush.msra.mxu0 %v238
    %378 = vmatpush.msra.mxu0 %v237
    %379 = vmatpush.msra.mxu0 %v236
    %380 = vmatpush.msra.mxu0 %v235
    %381 = vmatpush.msra.mxu0 %v234
    %382 = vmatpush.msra.mxu0 %v233
    %383 = vmatpush.msra.mxu0 %v232
    %384 = vmatpush.msra.mxu0 %v231
    %385 = vmatpush.msra.mxu0 %v230
    %386 = vmatpush.msra.mxu0 %v229
    %387 = vmatpush.msra.mxu0 %v228
    %388 = vmatpush.msra.mxu0 %v227
    %389 = vmatpush.msra.mxu0 %v226
    %390 = vmatpush.msra.mxu0 %v225
    %391 = vmatpush.msra.mxu0 %v224
    %392 = vmatpush.msra.mxu0 %v223
    %393 = vmatmul.f32.gmra.mxu0 %v345
    %v394 = vpop.f32.mrf.mxu0
    %v395 = vadd.f32 0.0, %v394
    %396 = vmatmul.f32.gmra.mxu0 %v346
    %v397 = vpop.f32.mrf.mxu0
    %v398 = vadd.f32 0.0, %v397
    %399 = vdwg.mxu0
    %v401 = vsel %vm59, %v375, 0
    %v404 = vsel %vm59, %v376, 0
    %406 = vmatpush.msra.mxu0 0.0
    %407 = vmatpush.msra.mxu0 0.0
    %408 = vmatpush.msra.mxu0 0.0
    %409 = vmatpush.msra.mxu0 0.0
    %410 = vmatpush.msra.mxu0 0.0
    %411 = vmatpush.msra.mxu0 0.0
    %412 = vmatpush.msra.mxu0 0.0
    %413 = vmatpush.msra.mxu0 0.0
    %414 = vmatpush.msra.mxu0 0.0
    %415 = vmatpush.msra.mxu0 0.0
    %416 = vmatpush.msra.mxu0 0.0
    %417 = vmatpush.msra.mxu0 0.0
    %418 = vmatpush.msra.mxu0 %v222
    %419 = vmatpush.msra.mxu0 %v221
    %420 = vmatpush.msra.mxu0 %v220
    %421 = vmatpush.msra.mxu0 %v219
    %422 = vmatmul.f32.gmra.mxu0 %v401
    %v423 = vpop.f32.mrf.mxu0
    %v424 = vadd.f32 %v395, %v423
    %425 = vmatmul.f32.gmra.mxu0 %v404
    %v426 = vpop.f32.mrf.mxu0
    %v427 = vadd.f32 %v398, %v426
    %428 = vdwg.mxu0
    %v429 = vadd.f32 %v424, %v241
    %v430 = vadd.f32 %v427, %v241
    %v431 = vmax.f32 %v429, 0.0
    %v432 = vmax.f32 %v430, 0.0
    %435 = vrot.lane.b32.xlu0 %v335, 96
    %v436 = vpop.permute.xlu0 %435
    %437 = vrot.lane.b32.xlu0 %v336, 96
    %v438 = vpop.permute.xlu0 %437
    %441 = vrot.lane.b32.xlu0 %v375, 96
    %v442 = vpop.permute.xlu0 %441
    %443 = vrot.lane.b32.xlu0 %v376, 96
    %v444 = vpop.permute.xlu0 %443
    %v447 = vsel %vm334, %v436, %v442
    %v448 = vsel %vm334, %v438, %v444
    %451 = vrot.lane.b32.xlu0 %v345, 96
    %v452 = vpop.permute.xlu0 %451
    %453 = vrot.lane.b32.xlu0 %v346, 96
    %v454 = vpop.permute.xlu0 %453
    %459 = vrot.lane.b32.xlu0 %v431, 96
    %v460 = vpop.permute.xlu0 %459
    %461 = vrot.lane.b32.xlu0 %v432, 96
    %v462 = vpop.permute.xlu0 %461
    %v465 = vsel %vm334, %v452, %v460
    %v466 = vsel %vm334, %v454, %v462
    %s467 = scalar_lea.vmem [#allocation2], 32
    %v468 = vld [vmem:[%s467] sm:$0xff]
    %v469 = vld [vmem:[%s467 + $0x8] sm:$0xff]
    %470 = vmatpush.msra.mxu0 %v218
    %471 = vmatpush.msra.mxu0 %v217
    %472 = vmatpush.msra.mxu0 %v216
    %473 = vmatpush.msra.mxu0 %v215
    %474 = vmatpush.msra.mxu0 %v214
    %475 = vmatpush.msra.mxu0 %v213
    %476 = vmatpush.msra.mxu0 %v212
    %477 = vmatpush.msra.mxu0 %v211
    %478 = vmatpush.msra.mxu0 %v210
    %479 = vmatpush.msra.mxu0 %v209
    %480 = vmatpush.msra.mxu0 %v208
    %481 = vmatpush.msra.mxu0 %v207
    %482 = vmatpush.msra.mxu0 %v206
    %483 = vmatpush.msra.mxu0 %v205
    %484 = vmatpush.msra.mxu0 %v204
    %485 = vmatpush.msra.mxu0 %v203
    %486 = vmatmul.f32.gmra.mxu0 %v447
    %v487 = vpop.f32.mrf.mxu0
    %v488 = vadd.f32 0.0, %v487
    %489 = vmatmul.f32.gmra.mxu0 %v448
    %v490 = vpop.f32.mrf.mxu0
    %v491 = vadd.f32 0.0, %v490
    %492 = vdwg.mxu0
    %v493 = vadd.f32 %v468, %v488
    %v494 = vadd.f32 %v469, %v491
    %v495 = vtanh.pop %v493
    %v496 = vtanh.pop %v494
    %497 = vmatpush.msra.mxu0 %v238
    %498 = vmatpush.msra.mxu0 %v237
    %499 = vmatpush.msra.mxu0 %v236
    %500 = vmatpush.msra.mxu0 %v235
    %501 = vmatpush.msra.mxu0 %v234
    %502 = vmatpush.msra.mxu0 %v233
    %503 = vmatpush.msra.mxu0 %v232
    %504 = vmatpush.msra.mxu0 %v231
    %505 = vmatpush.msra.mxu0 %v230
    %506 = vmatpush.msra.mxu0 %v229
    %507 = vmatpush.msra.mxu0 %v228
    %508 = vmatpush.msra.mxu0 %v227
    %509 = vmatpush.msra.mxu0 %v226
    %510 = vmatpush.msra.mxu0 %v225
    %511 = vmatpush.msra.mxu0 %v224
    %512 = vmatpush.msra.mxu0 %v223
    %513 = vmatmul.f32.gmra.mxu0 %v465
    %v514 = vpop.f32.mrf.mxu0
    %v515 = vadd.f32 0.0, %v514
    %516 = vmatmul.f32.gmra.mxu0 %v466
    %v517 = vpop.f32.mrf.mxu0
    %v518 = vadd.f32 0.0, %v517
    %519 = vdwg.mxu0
    %v521 = vsel %vm59, %v495, 0
    %v524 = vsel %vm59, %v496, 0
    %526 = vmatpush.msra.mxu0 0.0
    %527 = vmatpush.msra.mxu0 0.0
    %528 = vmatpush.msra.mxu0 0.0
    %529 = vmatpush.msra.mxu0 0.0
    %530 = vmatpush.msra.mxu0 0.0
    %531 = vmatpush.msra.mxu0 0.0
    %532 = vmatpush.msra.mxu0 0.0
    %533 = vmatpush.msra.mxu0 0.0
    %534 = vmatpush.msra.mxu0 0.0
    %535 = vmatpush.msra.mxu0 0.0
    %536 = vmatpush.msra.mxu0 0.0
    %537 = vmatpush.msra.mxu0 0.0
    %538 = vmatpush.msra.mxu0 %v222
    %539 = vmatpush.msra.mxu0 %v221
    %540 = vmatpush.msra.mxu0 %v220
    %541 = vmatpush.msra.mxu0 %v219
    %542 = vmatmul.f32.gmra.mxu0 %v521
    %v543 = vpop.f32.mrf.mxu0
    %v544 = vadd.f32 %v515, %v543
    %545 = vmatmul.f32.gmra.mxu0 %v524
    %v546 = vpop.f32.mrf.mxu0
    %v547 = vadd.f32 %v518, %v546
    %548 = vdwg.mxu0
    %v549 = vadd.f32 %v544, %v241
    %v550 = vadd.f32 %v547, %v241
    %v551 = vmax.f32 %v549, 0.0
    %v552 = vmax.f32 %v550, 0.0
    %555 = vrot.lane.b32.xlu0 %v447, 96
    %v556 = vpop.permute.xlu0 %555
    %557 = vrot.lane.b32.xlu0 %v448, 96
    %v558 = vpop.permute.xlu0 %557
    %561 = vrot.lane.b32.xlu0 %v495, 96
    %v562 = vpop.permute.xlu0 %561
    %563 = vrot.lane.b32.xlu0 %v496, 96
    %v564 = vpop.permute.xlu0 %563
    %v567 = vsel %vm334, %v556, %v562
    %v568 = vsel %vm334, %v558, %v564
    %571 = vrot.lane.b32.xlu0 %v465, 96
    %v572 = vpop.permute.xlu0 %571
    %573 = vrot.lane.b32.xlu0 %v466, 96
    %v574 = vpop.permute.xlu0 %573
    %579 = vrot.lane.b32.xlu0 %v551, 96
    %v580 = vpop.permute.xlu0 %579
    %581 = vrot.lane.b32.xlu0 %v552, 96
    %v582 = vpop.permute.xlu0 %581
    %v585 = vsel %vm334, %v572, %v580
    %v586 = vsel %vm334, %v574, %v582
    %s587 = scalar_lea.vmem [#allocation2], 48
    %v588 = vld [vmem:[%s587] sm:$0xff]
    %v589 = vld [vmem:[%s587 + $0x8] sm:$0xff]
    %590 = vmatpush.msra.mxu0 %v218
    %591 = vmatpush.msra.mxu0 %v217
    %592 = vmatpush.msra.mxu0 %v216
    %593 = vmatpush.msra.mxu0 %v215
    %594 = vmatpush.msra.mxu0 %v214
    %595 = vmatpush.msra.mxu0 %v213
    %596 = vmatpush.msra.mxu0 %v212
    %597 = vmatpush.msra.mxu0 %v211
    %598 = vmatpush.msra.mxu0 %v210
    %599 = vmatpush.msra.mxu0 %v209
    %600 = vmatpush.msra.mxu0 %v208
    %601 = vmatpush.msra.mxu0 %v207
    %602 = vmatpush.msra.mxu0 %v206
    %603 = vmatpush.msra.mxu0 %v205
    %604 = vmatpush.msra.mxu0 %v204
    %605 = vmatpush.msra.mxu0 %v203
    %606 = vmatmul.f32.gmra.mxu0 %v567
    %v607 = vpop.f32.mrf.mxu0
    %v608 = vadd.f32 0.0, %v607
    %609 = vmatmul.f32.gmra.mxu0 %v568
    %v610 = vpop.f32.mrf.mxu0
    %v611 = vadd.f32 0.0, %v610
    %612 = vdwg.mxu0
    %v613 = vadd.f32 %v588, %v608
    %v614 = vadd.f32 %v589, %v611
    %v615 = vtanh.pop %v613
    %v616 = vtanh.pop %v614
    %617 = vmatpush.msra.mxu0 %v238
    %618 = vmatpush.msra.mxu0 %v237
    %619 = vmatpush.msra.mxu0 %v236
    %620 = vmatpush.msra.mxu0 %v235
    %621 = vmatpush.msra.mxu0 %v234
    %622 = vmatpush.msra.mxu0 %v233
    %623 = vmatpush.msra.mxu0 %v232
    %624 = vmatpush.msra.mxu0 %v231
    %625 = vmatpush.msra.mxu0 %v230
    %626 = vmatpush.msra.mxu0 %v229
    %627 = vmatpush.msra.mxu0 %v228
    %628 = vmatpush.msra.mxu0 %v227
    %629 = vmatpush.msra.mxu0 %v226
    %630 = vmatpush.msra.mxu0 %v225
    %631 = vmatpush.msra.mxu0 %v224
    %632 = vmatpush.msra.mxu0 %v223
    %633 = vmatmul.f32.gmra.mxu0 %v585
    %v634 = vpop.f32.mrf.mxu0
    %v635 = vadd.f32 0.0, %v634
    %636 = vmatmul.f32.gmra.mxu0 %v586
    %v637 = vpop.f32.mrf.mxu0
    %v638 = vadd.f32 0.0, %v637
    %639 = vdwg.mxu0
    %v641 = vsel %vm59, %v615, 0
    %v644 = vsel %vm59, %v616, 0
    %646 = vmatpush.msra.mxu0 0.0
    %647 = vmatpush.msra.mxu0 0.0
    %648 = vmatpush.msra.mxu0 0.0
    %649 = vmatpush.msra.mxu0 0.0
    %650 = vmatpush.msra.mxu0 0.0
    %651 = vmatpush.msra.mxu0 0.0
    %652 = vmatpush.msra.mxu0 0.0
    %653 = vmatpush.msra.mxu0 0.0
    %654 = vmatpush.msra.mxu0 0.0
    %655 = vmatpush.msra.mxu0 0.0
    %656 = vmatpush.msra.mxu0 0.0
    %657 = vmatpush.msra.mxu0 0.0
    %658 = vmatpush.msra.mxu0 %v222
    %659 = vmatpush.msra.mxu0 %v221
    %660 = vmatpush.msra.mxu0 %v220
    %661 = vmatpush.msra.mxu0 %v219
    %662 = vmatmul.f32.gmra.mxu0 %v641
    %v663 = vpop.f32.mrf.mxu0
    %v664 = vadd.f32 %v635, %v663
    %665 = vmatmul.f32.gmra.mxu0 %v644
    %v666 = vpop.f32.mrf.mxu0
    %v667 = vadd.f32 %v638, %v666
    %668 = vdwg.mxu0
    %v669 = vadd.f32 %v664, %v241
    %v670 = vadd.f32 %v667, %v241
    %v671 = vmax.f32 %v669, 0.0
    %v672 = vmax.f32 %v670, 0.0
    %675 = vrot.lane.b32.xlu0 %v567, 96
    %v676 = vpop.permute.xlu0 %675
    %677 = vrot.lane.b32.xlu0 %v568, 96
    %v678 = vpop.permute.xlu0 %677
    %681 = vrot.lane.b32.xlu0 %v615, 96
    %v682 = vpop.permute.xlu0 %681
    %683 = vrot.lane.b32.xlu0 %v616, 96
    %v684 = vpop.permute.xlu0 %683
    %v687 = vsel %vm334, %v676, %v682
    %v688 = vsel %vm334, %v678, %v684
    %691 = vrot.lane.b32.xlu0 %v585, 96
    %v692 = vpop.permute.xlu0 %691
    %693 = vrot.lane.b32.xlu0 %v586, 96
    %v694 = vpop.permute.xlu0 %693
    %699 = vrot.lane.b32.xlu0 %v671, 96
    %v700 = vpop.permute.xlu0 %699
    %701 = vrot.lane.b32.xlu0 %v672, 96
    %v702 = vpop.permute.xlu0 %701
    %v705 = vsel %vm334, %v692, %v700
    %v706 = vsel %vm334, %v694, %v702
    %s707 = scalar_lea.vmem [#allocation2], 64
    %v708 = vld [vmem:[%s707] sm:$0xff]
    %v709 = vld [vmem:[%s707 + $0x8] sm:$0xff]
    %710 = vmatpush.msra.mxu0 %v218
    %711 = vmatpush.msra.mxu0 %v217
    %712 = vmatpush.msra.mxu0 %v216
    %713 = vmatpush.msra.mxu0 %v215
    %714 = vmatpush.msra.mxu0 %v214
    %715 = vmatpush.msra.mxu0 %v213
    %716 = vmatpush.msra.mxu0 %v212
    %717 = vmatpush.msra.mxu0 %v211
    %718 = vmatpush.msra.mxu0 %v210
    %719 = vmatpush.msra.mxu0 %v209
    %720 = vmatpush.msra.mxu0 %v208
    %721 = vmatpush.msra.mxu0 %v207
    %722 = vmatpush.msra.mxu0 %v206
    %723 = vmatpush.msra.mxu0 %v205
    %724 = vmatpush.msra.mxu0 %v204
    %725 = vmatpush.msra.mxu0 %v203
    %726 = vmatmul.f32.gmra.mxu0 %v687
    %v727 = vpop.f32.mrf.mxu0
    %v728 = vadd.f32 0.0, %v727
    %729 = vmatmul.f32.gmra.mxu0 %v688
    %v730 = vpop.f32.mrf.mxu0
    %v731 = vadd.f32 0.0, %v730
    %732 = vdwg.mxu0
    %v733 = vadd.f32 %v708, %v728
    %v734 = vadd.f32 %v709, %v731
    %v735 = vtanh.pop %v733
    %v736 = vtanh.pop %v734
    %737 = vmatpush.msra.mxu0 %v238
    %738 = vmatpush.msra.mxu0 %v237
    %739 = vmatpush.msra.mxu0 %v236
    %740 = vmatpush.msra.mxu0 %v235
    %741 = vmatpush.msra.mxu0 %v234
    %742 = vmatpush.msra.mxu0 %v233
    %743 = vmatpush.msra.mxu0 %v232
    %744 = vmatpush.msra.mxu0 %v231
    %745 = vmatpush.msra.mxu0 %v230
    %746 = vmatpush.msra.mxu0 %v229
    %747 = vmatpush.msra.mxu0 %v228
    %748 = vmatpush.msra.mxu0 %v227
    %749 = vmatpush.msra.mxu0 %v226
    %750 = vmatpush.msra.mxu0 %v225
    %751 = vmatpush.msra.mxu0 %v224
    %752 = vmatpush.msra.mxu0 %v223
    %753 = vmatmul.f32.gmra.mxu0 %v705
    %v754 = vpop.f32.mrf.mxu0
    %v755 = vadd.f32 0.0, %v754
    %756 = vmatmul.f32.gmra.mxu0 %v706
    %v757 = vpop.f32.mrf.mxu0
    %v758 = vadd.f32 0.0, %v757
    %759 = vdwg.mxu0
    %v761 = vsel %vm59, %v735, 0
    %v764 = vsel %vm59, %v736, 0
    %766 = vmatpush.msra.mxu0 0.0
    %767 = vmatpush.msra.mxu0 0.0
    %768 = vmatpush.msra.mxu0 0.0
    %769 = vmatpush.msra.mxu0 0.0
    %770 = vmatpush.msra.mxu0 0.0
    %771 = vmatpush.msra.mxu0 0.0
    %772 = vmatpush.msra.mxu0 0.0
    %773 = vmatpush.msra.mxu0 0.0
    %774 = vmatpush.msra.mxu0 0.0
    %775 = vmatpush.msra.mxu0 0.0
    %776 = vmatpush.msra.mxu0 0.0
    %777 = vmatpush.msra.mxu0 0.0
    %778 = vmatpush.msra.mxu0 %v222
    %779 = vmatpush.msra.mxu0 %v221
    %780 = vmatpush.msra.mxu0 %v220
    %781 = vmatpush.msra.mxu0 %v219
    %782 = vmatmul.f32.gmra.mxu0 %v761
    %v783 = vpop.f32.mrf.mxu0
    %v784 = vadd.f32 %v755, %v783
    %785 = vmatmul.f32.gmra.mxu0 %v764
    %v786 = vpop.f32.mrf.mxu0
    %v787 = vadd.f32 %v758, %v786
    %788 = vdwg.mxu0
    %v789 = vadd.f32 %v784, %v241
    %v790 = vadd.f32 %v787, %v241
    %v791 = vmax.f32 %v789, 0.0
    %v792 = vmax.f32 %v790, 0.0
    %795 = vrot.lane.b32.xlu0 %v687, 96
    %v796 = vpop.permute.xlu0 %795
    %797 = vrot.lane.b32.xlu0 %v688, 96
    %v798 = vpop.permute.xlu0 %797
    %801 = vrot.lane.b32.xlu0 %v735, 96
    %v802 = vpop.permute.xlu0 %801
    %803 = vrot.lane.b32.xlu0 %v736, 96
    %v804 = vpop.permute.xlu0 %803
    %v807 = vsel %vm334, %v796, %v802
    %v808 = vsel %vm334, %v798, %v804
    %811 = vrot.lane.b32.xlu0 %v705, 96
    %v812 = vpop.permute.xlu0 %811
    %813 = vrot.lane.b32.xlu0 %v706, 96
    %v814 = vpop.permute.xlu0 %813
    %819 = vrot.lane.b32.xlu0 %v791, 96
    %v820 = vpop.permute.xlu0 %819
    %821 = vrot.lane.b32.xlu0 %v792, 96
    %v822 = vpop.permute.xlu0 %821
    %v825 = vsel %vm334, %v812, %v820
    %v826 = vsel %vm334, %v814, %v822
    %s827 = scalar_lea.vmem [#allocation2], 80
    %v828 = vld [vmem:[%s827] sm:$0xff]
    %v829 = vld [vmem:[%s827 + $0x8] sm:$0xff]
    %830 = vmatpush.msra.mxu0 %v218
    %831 = vmatpush.msra.mxu0 %v217
    %832 = vmatpush.msra.mxu0 %v216
    %833 = vmatpush.msra.mxu0 %v215
    %834 = vmatpush.msra.mxu0 %v214
    %835 = vmatpush.msra.mxu0 %v213
    %836 = vmatpush.msra.mxu0 %v212
    %837 = vmatpush.msra.mxu0 %v211
    %838 = vmatpush.msra.mxu0 %v210
    %839 = vmatpush.msra.mxu0 %v209
    %840 = vmatpush.msra.mxu0 %v208
    %841 = vmatpush.msra.mxu0 %v207
    %842 = vmatpush.msra.mxu0 %v206
    %843 = vmatpush.msra.mxu0 %v205
    %844 = vmatpush.msra.mxu0 %v204
    %845 = vmatpush.msra.mxu0 %v203
    %846 = vmatmul.f32.gmra.mxu0 %v807
    %v847 = vpop.f32.mrf.mxu0
    %v848 = vadd.f32 0.0, %v847
    %849 = vmatmul.f32.gmra.mxu0 %v808
    %v850 = vpop.f32.mrf.mxu0
    %v851 = vadd.f32 0.0, %v850
    %852 = vdwg.mxu0
    %v853 = vadd.f32 %v828, %v848
    %v854 = vadd.f32 %v829, %v851
    %v855 = vtanh.pop %v853
    %v856 = vtanh.pop %v854
    %857 = vmatpush.msra.mxu0 %v238
    %858 = vmatpush.msra.mxu0 %v237
    %859 = vmatpush.msra.mxu0 %v236
    %860 = vmatpush.msra.mxu0 %v235
    %861 = vmatpush.msra.mxu0 %v234
    %862 = vmatpush.msra.mxu0 %v233
    %863 = vmatpush.msra.mxu0 %v232
    %864 = vmatpush.msra.mxu0 %v231
    %865 = vmatpush.msra.mxu0 %v230
    %866 = vmatpush.msra.mxu0 %v229
    %867 = vmatpush.msra.mxu0 %v228
    %868 = vmatpush.msra.mxu0 %v227
    %869 = vmatpush.msra.mxu0 %v226
    %870 = vmatpush.msra.mxu0 %v225
    %871 = vmatpush.msra.mxu0 %v224
    %872 = vmatpush.msra.mxu0 %v223
    %873 = vmatmul.f32.gmra.mxu0 %v825
    %v874 = vpop.f32.mrf.mxu0
    %v875 = vadd.f32 0.0, %v874
    %876 = vmatmul.f32.gmra.mxu0 %v826
    %v877 = vpop.f32.mrf.mxu0
    %v878 = vadd.f32 0.0, %v877
    %879 = vdwg.mxu0
    %v881 = vsel %vm59, %v855, 0
    %v884 = vsel %vm59, %v856, 0
    %886 = vmatpush.msra.mxu0 0.0
    %887 = vmatpush.msra.mxu0 0.0
    %888 = vmatpush.msra.mxu0 0.0
    %889 = vmatpush.msra.mxu0 0.0
    %890 = vmatpush.msra.mxu0 0.0
    %891 = vmatpush.msra.mxu0 0.0
    %892 = vmatpush.msra.mxu0 0.0
    %893 = vmatpush.msra.mxu0 0.0
    %894 = vmatpush.msra.mxu0 0.0
    %895 = vmatpush.msra.mxu0 0.0
    %896 = vmatpush.msra.mxu0 0.0
    %897 = vmatpush.msra.mxu0 0.0
    %898 = vmatpush.msra.mxu0 %v222
    %899 = vmatpush.msra.mxu0 %v221
    %900 = vmatpush.msra.mxu0 %v220
    %901 = vmatpush.msra.mxu0 %v219
    %902 = vmatmul.f32.gmra.mxu0 %v881
    %v903 = vpop.f32.mrf.mxu0
    %v904 = vadd.f32 %v875, %v903
    %905 = vmatmul.f32.gmra.mxu0 %v884
    %v906 = vpop.f32.mrf.mxu0
    %v907 = vadd.f32 %v878, %v906
    %908 = vdwg.mxu0
    %v909 = vadd.f32 %v904, %v241
    %v910 = vadd.f32 %v907, %v241
    %v911 = vmax.f32 %v909, 0.0
    %v912 = vmax.f32 %v910, 0.0
    %915 = vrot.lane.b32.xlu0 %v807, 96
    %v916 = vpop.permute.xlu0 %915
    %917 = vrot.lane.b32.xlu0 %v808, 96
    %v918 = vpop.permute.xlu0 %917
    %921 = vrot.lane.b32.xlu0 %v855, 96
    %v922 = vpop.permute.xlu0 %921
    %923 = vrot.lane.b32.xlu0 %v856, 96
    %v924 = vpop.permute.xlu0 %923
    %v927 = vsel %vm334, %v916, %v922
    %v928 = vsel %vm334, %v918, %v924
    %931 = vrot.lane.b32.xlu0 %v825, 96
    %v932 = vpop.permute.xlu0 %931
    %933 = vrot.lane.b32.xlu0 %v826, 96
    %v934 = vpop.permute.xlu0 %933
    %939 = vrot.lane.b32.xlu0 %v911, 96
    %v940 = vpop.permute.xlu0 %939
    %941 = vrot.lane.b32.xlu0 %v912, 96
    %v942 = vpop.permute.xlu0 %941
    %v945 = vsel %vm334, %v932, %v940
    %v946 = vsel %vm334, %v934, %v942
    %s947 = scalar_lea.vmem [#allocation2], 96
    %v948 = vld [vmem:[%s947] sm:$0xff]
    %v949 = vld [vmem:[%s947 + $0x8] sm:$0xff]
    %950 = vmatpush.msra.mxu0 %v218
    %951 = vmatpush.msra.mxu0 %v217
    %952 = vmatpush.msra.mxu0 %v216
    %953 = vmatpush.msra.mxu0 %v215
    %954 = vmatpush.msra.mxu0 %v214
    %955 = vmatpush.msra.mxu0 %v213
    %956 = vmatpush.msra.mxu0 %v212
    %957 = vmatpush.msra.mxu0 %v211
    %958 = vmatpush.msra.mxu0 %v210
    %959 = vmatpush.msra.mxu0 %v209
    %960 = vmatpush.msra.mxu0 %v208
    %961 = vmatpush.msra.mxu0 %v207
    %962 = vmatpush.msra.mxu0 %v206
    %963 = vmatpush.msra.mxu0 %v205
    %964 = vmatpush.msra.mxu0 %v204
    %965 = vmatpush.msra.mxu0 %v203
    %966 = vmatmul.f32.gmra.mxu0 %v927
    %v967 = vpop.f32.mrf.mxu0
    %v968 = vadd.f32 0.0, %v967
    %969 = vmatmul.f32.gmra.mxu0 %v928
    %v970 = vpop.f32.mrf.mxu0
    %v971 = vadd.f32 0.0, %v970
    %972 = vdwg.mxu0
    %v973 = vadd.f32 %v948, %v968
    %v974 = vadd.f32 %v949, %v971
    %v975 = vtanh.pop %v973
    %v976 = vtanh.pop %v974
    %977 = vmatpush.msra.mxu0 %v238
    %978 = vmatpush.msra.mxu0 %v237
    %979 = vmatpush.msra.mxu0 %v236
    %980 = vmatpush.msra.mxu0 %v235
    %981 = vmatpush.msra.mxu0 %v234
    %982 = vmatpush.msra.mxu0 %v233
    %983 = vmatpush.msra.mxu0 %v232
    %984 = vmatpush.msra.mxu0 %v231
    %985 = vmatpush.msra.mxu0 %v230
    %986 = vmatpush.msra.mxu0 %v229
    %987 = vmatpush.msra.mxu0 %v228
    %988 = vmatpush.msra.mxu0 %v227
    %989 = vmatpush.msra.mxu0 %v226
    %990 = vmatpush.msra.mxu0 %v225
    %991 = vmatpush.msra.mxu0 %v224
    %992 = vmatpush.msra.mxu0 %v223
    %993 = vmatmul.f32.gmra.mxu0 %v945
    %v994 = vpop.f32.mrf.mxu0
    %v995 = vadd.f32 0.0, %v994
    %996 = vmatmul.f32.gmra.mxu0 %v946
    %v997 = vpop.f32.mrf.mxu0
    %v998 = vadd.f32 0.0, %v997
    %999 = vdwg.mxu0
    %v1001 = vsel %vm59, %v975, 0
    %v1004 = vsel %vm59, %v976, 0
    %1006 = vmatpush.msra.mxu0 0.0
    %1007 = vmatpush.msra.mxu0 0.0
    %1008 = vmatpush.msra.mxu0 0.0
    %1009 = vmatpush.msra.mxu0 0.0
    %1010 = vmatpush.msra.mxu0 0.0
    %1011 = vmatpush.msra.mxu0 0.0
    %1012 = vmatpush.msra.mxu0 0.0
    %1013 = vmatpush.msra.mxu0 0.0
    %1014 = vmatpush.msra.mxu0 0.0
    %1015 = vmatpush.msra.mxu0 0.0
    %1016 = vmatpush.msra.mxu0 0.0
    %1017 = vmatpush.msra.mxu0 0.0
    %1018 = vmatpush.msra.mxu0 %v222
    %1019 = vmatpush.msra.mxu0 %v221
    %1020 = vmatpush.msra.mxu0 %v220
    %1021 = vmatpush.msra.mxu0 %v219
    %1022 = vmatmul.f32.gmra.mxu0 %v1001
    %v1023 = vpop.f32.mrf.mxu0
    %v1024 = vadd.f32 %v995, %v1023
    %1025 = vmatmul.f32.gmra.mxu0 %v1004
    %v1026 = vpop.f32.mrf.mxu0
    %v1027 = vadd.f32 %v998, %v1026
    %1028 = vdwg.mxu0
    %v1029 = vadd.f32 %v1024, %v241
    %v1030 = vadd.f32 %v1027, %v241
    %v1031 = vmax.f32 %v1029, 0.0
    %v1032 = vmax.f32 %v1030, 0.0
    %1035 = vrot.lane.b32.xlu0 %v927, 96
    %v1036 = vpop.permute.xlu0 %1035
    %1037 = vrot.lane.b32.xlu0 %v928, 96
    %v1038 = vpop.permute.xlu0 %1037
    %1041 = vrot.lane.b32.xlu0 %v975, 96
    %v1042 = vpop.permute.xlu0 %1041
    %1043 = vrot.lane.b32.xlu0 %v976, 96
    %v1044 = vpop.permute.xlu0 %1043
    %v1047 = vsel %vm334, %v1036, %v1042
    %v1048 = vsel %vm334, %v1038, %v1044
    %1051 = vrot.lane.b32.xlu0 %v945, 96
    %v1052 = vpop.permute.xlu0 %1051
    %1053 = vrot.lane.b32.xlu0 %v946, 96
    %v1054 = vpop.permute.xlu0 %1053
    %1059 = vrot.lane.b32.xlu0 %v1031, 96
    %v1060 = vpop.permute.xlu0 %1059
    %1061 = vrot.lane.b32.xlu0 %v1032, 96
    %v1062 = vpop.permute.xlu0 %1061
    %v1065 = vsel %vm334, %v1052, %v1060
    %v1066 = vsel %vm334, %v1054, %v1062
    %s1067 = scalar_lea.vmem [#allocation2], 112
    %v1068 = vld [vmem:[%s1067] sm:$0xff]
    %v1069 = vld [vmem:[%s1067 + $0x8] sm:$0xff]
    %1070 = vmatpush.msra.mxu0 %v218
    %1071 = vmatpush.msra.mxu0 %v217
    %1072 = vmatpush.msra.mxu0 %v216
    %1073 = vmatpush.msra.mxu0 %v215
    %1074 = vmatpush.msra.mxu0 %v214
    %1075 = vmatpush.msra.mxu0 %v213
    %1076 = vmatpush.msra.mxu0 %v212
    %1077 = vmatpush.msra.mxu0 %v211
    %1078 = vmatpush.msra.mxu0 %v210
    %1079 = vmatpush.msra.mxu0 %v209
    %1080 = vmatpush.msra.mxu0 %v208
    %1081 = vmatpush.msra.mxu0 %v207
    %1082 = vmatpush.msra.mxu0 %v206
    %1083 = vmatpush.msra.mxu0 %v205
    %1084 = vmatpush.msra.mxu0 %v204
    %1085 = vmatpush.msra.mxu0 %v203
    %1086 = vmatmul.f32.gmra.mxu0 %v1047
    %v1087 = vpop.f32.mrf.mxu0
    %v1088 = vadd.f32 0.0, %v1087
    %1089 = vmatmul.f32.gmra.mxu0 %v1048
    %v1090 = vpop.f32.mrf.mxu0
    %v1091 = vadd.f32 0.0, %v1090
    %1092 = vdwg.mxu0
    %v1093 = vadd.f32 %v1068, %v1088
    %v1094 = vadd.f32 %v1069, %v1091
    %v1095 = vtanh.pop %v1093
    %v1096 = vtanh.pop %v1094
    %1097 = vmatpush.msra.mxu0 %v238
    %1098 = vmatpush.msra.mxu0 %v237
    %1099 = vmatpush.msra.mxu0 %v236
    %1100 = vmatpush.msra.mxu0 %v235
    %1101 = vmatpush.msra.mxu0 %v234
    %1102 = vmatpush.msra.mxu0 %v233
    %1103 = vmatpush.msra.mxu0 %v232
    %1104 = vmatpush.msra.mxu0 %v231
    %1105 = vmatpush.msra.mxu0 %v230
    %1106 = vmatpush.msra.mxu0 %v229
    %1107 = vmatpush.msra.mxu0 %v228
    %1108 = vmatpush.msra.mxu0 %v227
    %1109 = vmatpush.msra.mxu0 %v226
    %1110 = vmatpush.msra.mxu0 %v225
    %1111 = vmatpush.msra.mxu0 %v224
    %1112 = vmatpush.msra.mxu0 %v223
    %1113 = vmatmul.f32.gmra.mxu0 %v1065
    %v1114 = vpop.f32.mrf.mxu0
    %v1115 = vadd.f32 0.0, %v1114
    %1116 = vmatmul.f32.gmra.mxu0 %v1066
    %v1117 = vpop.f32.mrf.mxu0
    %v1118 = vadd.f32 0.0, %v1117
    %1119 = vdwg.mxu0
    %v1121 = vsel %vm59, %v1095, 0
    %v1124 = vsel %vm59, %v1096, 0
    %1126 = vmatpush.msra.mxu0 0.0
    %1127 = vmatpush.msra.mxu0 0.0
    %1128 = vmatpush.msra.mxu0 0.0
    %1129 = vmatpush.msra.mxu0 0.0
    %1130 = vmatpush.msra.mxu0 0.0
    %1131 = vmatpush.msra.mxu0 0.0
    %1132 = vmatpush.msra.mxu0 0.0
    %1133 = vmatpush.msra.mxu0 0.0
    %1134 = vmatpush.msra.mxu0 0.0
    %1135 = vmatpush.msra.mxu0 0.0
    %1136 = vmatpush.msra.mxu0 0.0
    %1137 = vmatpush.msra.mxu0 0.0
    %1138 = vmatpush.msra.mxu0 %v222
    %1139 = vmatpush.msra.mxu0 %v221
    %1140 = vmatpush.msra.mxu0 %v220
    %1141 = vmatpush.msra.mxu0 %v219
    %1142 = vmatmul.f32.gmra.mxu0 %v1121
    %v1143 = vpop.f32.mrf.mxu0
    %v1144 = vadd.f32 %v1115, %v1143
    %1145 = vmatmul.f32.gmra.mxu0 %v1124
    %v1146 = vpop.f32.mrf.mxu0
    %v1147 = vadd.f32 %v1118, %v1146
    %1148 = vdwg.mxu0
    %v1149 = vadd.f32 %v1144, %v241
    %v1150 = vadd.f32 %v1147, %v241
    %v1151 = vmax.f32 %v1149, 0.0
    %v1152 = vmax.f32 %v1150, 0.0
    %1155 = vrot.lane.b32.xlu0 %v1047, 96
    %v1156 = vpop.permute.xlu0 %1155
    %1157 = vrot.lane.b32.xlu0 %v1048, 96
    %v1158 = vpop.permute.xlu0 %1157
    %1161 = vrot.lane.b32.xlu0 %v1095, 96
    %v1162 = vpop.permute.xlu0 %1161
    %1163 = vrot.lane.b32.xlu0 %v1096, 96
    %v1164 = vpop.permute.xlu0 %1163
    %v1167 = vsel %vm334, %v1156, %v1162
    %v1168 = vsel %vm334, %v1158, %v1164
    %1171 = vrot.lane.b32.xlu0 %v1065, 96
    %v1172 = vpop.permute.xlu0 %1171
    %1173 = vrot.lane.b32.xlu0 %v1066, 96
    %v1174 = vpop.permute.xlu0 %1173
    %1179 = vrot.lane.b32.xlu0 %v1151, 96
    %v1180 = vpop.permute.xlu0 %1179
    %1181 = vrot.lane.b32.xlu0 %v1152, 96
    %v1182 = vpop.permute.xlu0 %1181
    %v1185 = vsel %vm334, %v1172, %v1180
    %v1186 = vsel %vm334, %v1174, %v1182
    %s1187 = scalar_lea.vmem [#allocation2], 128
    %v1188 = vld [vmem:[%s1187] sm:$0xff]
    %v1189 = vld [vmem:[%s1187 + $0x8] sm:$0xff]
    %1190 = vmatpush.msra.mxu0 %v218
    %1191 = vmatpush.msra.mxu0 %v217
    %1192 = vmatpush.msra.mxu0 %v216
    %1193 = vmatpush.msra.mxu0 %v215
    %1194 = vmatpush.msra.mxu0 %v214
    %1195 = vmatpush.msra.mxu0 %v213
    %1196 = vmatpush.msra.mxu0 %v212
    %1197 = vmatpush.msra.mxu0 %v211
    %1198 = vmatpush.msra.mxu0 %v210
    %1199 = vmatpush.msra.mxu0 %v209
    %1200 = vmatpush.msra.mxu0 %v208
    %1201 = vmatpush.msra.mxu0 %v207
    %1202 = vmatpush.msra.mxu0 %v206
    %1203 = vmatpush.msra.mxu0 %v205
    %1204 = vmatpush.msra.mxu0 %v204
    %1205 = vmatpush.msra.mxu0 %v203
    %1206 = vmatmul.f32.gmra.mxu0 %v1167
    %v1207 = vpop.f32.mrf.mxu0
    %v1208 = vadd.f32 0.0, %v1207
    %1209 = vmatmul.f32.gmra.mxu0 %v1168
    %v1210 = vpop.f32.mrf.mxu0
    %v1211 = vadd.f32 0.0, %v1210
    %1212 = vdwg.mxu0
    %v1213 = vadd.f32 %v1188, %v1208
    %v1214 = vadd.f32 %v1189, %v1211
    %v1215 = vtanh.pop %v1213
    %v1216 = vtanh.pop %v1214
    %1217 = vmatpush.msra.mxu0 %v238
    %1218 = vmatpush.msra.mxu0 %v237
    %1219 = vmatpush.msra.mxu0 %v236
    %1220 = vmatpush.msra.mxu0 %v235
    %1221 = vmatpush.msra.mxu0 %v234
    %1222 = vmatpush.msra.mxu0 %v233
    %1223 = vmatpush.msra.mxu0 %v232
    %1224 = vmatpush.msra.mxu0 %v231
    %1225 = vmatpush.msra.mxu0 %v230
    %1226 = vmatpush.msra.mxu0 %v229
    %1227 = vmatpush.msra.mxu0 %v228
    %1228 = vmatpush.msra.mxu0 %v227
    %1229 = vmatpush.msra.mxu0 %v226
    %1230 = vmatpush.msra.mxu0 %v225
    %1231 = vmatpush.msra.mxu0 %v224
    %1232 = vmatpush.msra.mxu0 %v223
    %1233 = vmatmul.f32.gmra.mxu0 %v1185
    %v1234 = vpop.f32.mrf.mxu0
    %v1235 = vadd.f32 0.0, %v1234
    %1236 = vmatmul.f32.gmra.mxu0 %v1186
    %v1237 = vpop.f32.mrf.mxu0
    %v1238 = vadd.f32 0.0, %v1237
    %1239 = vdwg.mxu0
    %v1241 = vsel %vm59, %v1215, 0
    %v1244 = vsel %vm59, %v1216, 0
    %1246 = vmatpush.msra.mxu0 0.0
    %1247 = vmatpush.msra.mxu0 0.0
    %1248 = vmatpush.msra.mxu0 0.0
    %1249 = vmatpush.msra.mxu0 0.0
    %1250 = vmatpush.msra.mxu0 0.0
    %1251 = vmatpush.msra.mxu0 0.0
    %1252 = vmatpush.msra.mxu0 0.0
    %1253 = vmatpush.msra.mxu0 0.0
    %1254 = vmatpush.msra.mxu0 0.0
    %1255 = vmatpush.msra.mxu0 0.0
    %1256 = vmatpush.msra.mxu0 0.0
    %1257 = vmatpush.msra.mxu0 0.0
    %1258 = vmatpush.msra.mxu0 %v222
    %1259 = vmatpush.msra.mxu0 %v221
    %1260 = vmatpush.msra.mxu0 %v220
    %1261 = vmatpush.msra.mxu0 %v219
    %1262 = vmatmul.f32.gmra.mxu0 %v1241
    %v1263 = vpop.f32.mrf.mxu0
    %v1264 = vadd.f32 %v1235, %v1263
    %1265 = vmatmul.f32.gmra.mxu0 %v1244
    %v1266 = vpop.f32.mrf.mxu0
    %v1267 = vadd.f32 %v1238, %v1266
    %1268 = vdwg.mxu0
    %v1269 = vadd.f32 %v1264, %v241
    %v1270 = vadd.f32 %v1267, %v241
    %v1271 = vmax.f32 %v1269, 0.0
    %v1272 = vmax.f32 %v1270, 0.0
    %1275 = vrot.lane.b32.xlu0 %v1185, 96
    %v1276 = vpop.permute.xlu0 %1275
    %1277 = vrot.lane.b32.xlu0 %v1186, 96
    %v1278 = vpop.permute.xlu0 %1277
    %1283 = vrot.lane.b32.xlu0 %v1271, 96
    %v1284 = vpop.permute.xlu0 %1283
    %1285 = vrot.lane.b32.xlu0 %v1272, 96
    %v1286 = vpop.permute.xlu0 %1285
    %v1289 = vsel %vm334, %v1276, %v1284
    %v1290 = vsel %vm334, %v1278, %v1286
    %v1291 = vld [vmem:[%s7] sm:$0xff]
    %v1292 = vld [vmem:[%s7 + $0x8] sm:$0xff]
    %v1293 = vld [vmem:[%s7 + $0x10] sm:$0xff]
    %v1294 = vld [vmem:[%s7 + $0x18] sm:$0xff]
    %v1295 = vld [vmem:[%s8] sm:$0x1]
    %v1297 = vperm.slane %v1295, 0
    %1301 = vrot.lane.b32.xlu0 %v1289, 32
    %v1302 = vpop.permute.xlu0 %1301
    %1303 = vrot.lane.b32.xlu0 %v1290, 32
    %v1304 = vpop.permute.xlu0 %1303
    %v1305 = vsel %vm59, %v1302, 0
    %v1307 = vsel %vm59, %v1304, 0
    %1309 = vmatpush.msra.mxu0 0.0
    %1310 = vmatpush.msra.mxu0 0.0
    %1311 = vmatpush.msra.mxu0 0.0
    %1312 = vmatpush.msra.mxu0 0.0
    %1313 = vmatpush.msra.mxu0 0.0
    %1314 = vmatpush.msra.mxu0 0.0
    %1315 = vmatpush.msra.mxu0 0.0
    %1316 = vmatpush.msra.mxu0 0.0
    %1317 = vmatpush.msra.mxu0 0.0
    %1318 = vmatpush.msra.mxu0 0.0
    %1319 = vmatpush.msra.mxu0 0.0
    %1320 = vmatpush.msra.mxu0 0.0
    %1321 = vmatpush.msra.mxu0 %v1294
    %1322 = vmatpush.msra.mxu0 %v1293
    %1323 = vmatpush.msra.mxu0 %v1292
    %1324 = vmatpush.msra.mxu0 %v1291
    %1325 = vmatmul.f32.gmra.mxu0 %v1305
    %v1326 = vpop.f32.mrf.mxu0
    %v1327 = vadd.f32 %v1297, %v1326
    %1328 = vmatmul.f32.gmra.mxu0 %v1307
    %v1329 = vpop.f32.mrf.mxu0
    %v1330 = vadd.f32 %v1297, %v1329
    %1331 = vdwg.mxu0
    %vm1332 = vcmask 130048
    %1333 = vst.msk [vmem:[#allocation3] sm:$0xff] %vm1332, %v1327
    %1334 = vst.msk [vmem:[#allocation3 + $0x8] sm:$0xff] %vm1332, %v1330
    // Predicated region
    $region38: #{_qcnet_oe_forward.1} parent=1 // pred_check
      _
    $region39: #{_qcnet_oe_forward.1} parent=1 // pred_check_branch
      %1336 = sbr.rel (0) target = $region41
    $region40: #{_qcnet_oe_forward.1} parent=1 // pred_region
      %1338 = vsyncadd [#allocation4], 0
      %s1339 = sshll.u32 [#allocation3], 4
      %s1340 = int_to_ptr.vmem [resolvable:$true] %s1339
      %s1341 = sshll.u32 %s9, 4
      %s1342 = int_to_ptr.hbm [resolvable:$true] %s1341
      %1347 = dma.vmem_to_hbm [thread:$0]  %s1340, 256, %s1342, [#allocation4], 128, 128, 8
    $region41: #{_qcnet_oe_forward.1} parent=1 // pred_fallthru
      _
    // Predicated region
    $region42: #{_qcnet_oe_forward.1} parent=1 // pred_check
      _
    $region43: #{_qcnet_oe_forward.1} parent=1 // pred_check_branch
      %1349 = sbr.rel (0) target = $region45
    $region44: #{_qcnet_oe_forward.1} parent=1 // pred_region
      %1351 = dma.done [#allocation4], 256
    $region45: #{_qcnet_oe_forward.1} parent=1 // pred_fallthru
      _
    %1352 = vsyncpa [#allocation4], 1

</llo_original>
